<compile_context>
chip_gen: v7x
topology: tpu7x:2x2x1
jax: 0.10.0
libtpu: 0.0.40
codegen_flags: <defaults>
</compile_context>

<pallas_src>
import jax
import jax.numpy as jnp
from jax.experimental import pallas as pl
from jax.experimental.pallas import tpu as pltpu

K = 32        # points per group
NPOINT = 32   # number of groups
INPUT_DIM = 3
HIDDEN1 = 64
HIDDEN2 = 128
OUTPUT_DIM = 64

ROW_TILE = 512   # rows per grid step (M=1024 -> grid=(2,), one block per v7x TC)
LANE = 128       # TPU lane width; output feature dim is padded to a multiple of this


def pointnet_mlp_kernel(x_ref, w1_ref, b1_ref, w2_ref, b2_ref, w3_ref, b3_ref, o_ref):
    # x_ref: (ROW_TILE, input_dim); weights/biases are full (resident) tiles.
    x = x_ref[...]
    w1 = w1_ref[...]            # (input_dim, HIDDEN1)
    b1 = b1_ref[...]            # (1, HIDDEN1)   -- read once, reused
    b2 = b2_ref[...]            # (1, HIDDEN2)
    b3 = b3_ref[...]            # (1, OUT_PAD)

    # Layer 1: contraction dim is tiny (3) -> do it on the VPU as broadcast FMAs
    # instead of a mostly-padded MXU pass. Statically unrolled over input_dim.
    h1 = b1
    for d in range(x_ref.shape[1]):
        h1 = h1 + x[:, d:d + 1] * w1[d:d + 1, :]
    h1 = jnp.maximum(h1, 0.0)                      # (ROW_TILE, HIDDEN1)

    # Layer 2 (MXU): (ROW_TILE,64) @ (64,128)
    h2 = jnp.dot(h1, w2_ref[...], preferred_element_type=jnp.float32) + b2
    h2 = jnp.maximum(h2, 0.0)                      # (ROW_TILE, HIDDEN2)

    # Layer 3 (MXU): (ROW_TILE,128) @ (128,OUT_PAD) -- OUT_PAD=128 so the store is
    # lane-dense (unmasked 128-lane vst); padding columns are zero.
    out = jnp.dot(h2, w3_ref[...], preferred_element_type=jnp.float32) + b3
    o_ref[...] = out.astype(o_ref.dtype)


def pointnet_forward(x, params):
    """x: (npoint, k, input_dim) float32 -> (npoint, k, output_dim) float32."""
    w1, b1, w2, b2, w3, b3 = params
    npoint, k, input_dim = x.shape
    out_dim = w3.shape[1]

    M = npoint * k
    x_flat = x.reshape(M, input_dim)

    # Pad rows so M is divisible by ROW_TILE (no-op at the default 32*32=1024).
    M_pad = pl.cdiv(M, ROW_TILE) * ROW_TILE
    if M_pad != M:
        x_flat = jnp.pad(x_flat, ((0, M_pad - M), (0, 0)))

    # Pad the last layer's output features up to the 128-lane width so stores are
    # unmasked / lane-dense; extra columns are zeros and get sliced off below.
    out_pad = pl.cdiv(out_dim, LANE) * LANE
    w3p = jnp.pad(w3, ((0, 0), (0, out_pad - out_dim)))
    b3p = jnp.pad(b3, ((0, 0), (0, out_pad - out_dim)))

    # Weights/biases are small: one full resident block (index_map always (0,0) =>
    # no re-DMA across grid steps).
    full = lambda arr: pl.BlockSpec(arr.shape, lambda i: (0, 0))

    out_flat = pl.pallas_call(
        pointnet_mlp_kernel,
        out_shape=jax.ShapeDtypeStruct((M_pad, out_pad), jnp.float32),
        grid_spec=pltpu.PrefetchScalarGridSpec(
            num_scalar_prefetch=0,
            grid=(M_pad // ROW_TILE,),
            in_specs=[
                pl.BlockSpec((ROW_TILE, input_dim), lambda i: (i, 0)),
                full(w1), full(b1),
                full(w2), full(b2),
                full(w3p), full(b3p),
            ],
            out_specs=pl.BlockSpec((ROW_TILE, out_pad), lambda i: (i, 0)),
        ),
        compiler_params=pltpu.CompilerParams(
            dimension_semantics=("parallel",),   # 2 blocks -> one per TC on v7x
        ),
    )(x_flat, w1, b1, w2, b2, w3p, b3p)

    return out_flat[:M, :out_dim].reshape(npoint, k, out_dim)


def init_params(key, input_dim, output_dim):
    """Deterministic init mimicking PyTorch nn.Linear default (U[-1/sqrt(fan_in), +1/sqrt(fan_in)]).
    Weights stored transposed relative to PyTorch: (in, out) so kernel does x @ W."""
    dims = [(input_dim, HIDDEN1), (HIDDEN1, HIDDEN2), (HIDDEN2, output_dim)]
    params = []
    keys = jax.random.split(key, 2 * len(dims))
    for idx, (fan_in, fan_out) in enumerate(dims):
        bound = 1.0 / jnp.sqrt(jnp.float32(fan_in))
        w = jax.random.uniform(keys[2 * idx], (fan_in, fan_out),
                               minval=-bound, maxval=bound, dtype=jnp.float32)
        # bias kept as (1, fan_out) for TPU-friendly 2D broadcasting inside the kernel
        b = jax.random.uniform(keys[2 * idx + 1], (1, fan_out),
                               minval=-bound, maxval=bound, dtype=jnp.float32)
        params += [w, b]
    return tuple(params)


def reference_forward(x, params):
    """Pure-JAX reference matching the PyTorch module semantics."""
    w1, b1, w2, b2, w3, b3 = params
    npoint, k, input_dim = x.shape
    h = x.reshape(npoint * k, input_dim)
    h = jnp.maximum(h @ w1 + b1, 0.0)
    h = jnp.maximum(h @ w2 + b2, 0.0)
    h = h @ w3 + b3
    return h.reshape(npoint, k, -1)


if __name__ == "__main__":
    key = jax.random.PRNGKey(0)
    k_x, k_p = jax.random.split(key)

    x = jax.random.normal(k_x, (NPOINT, K, INPUT_DIM), dtype=jnp.float32)
    params = init_params(k_p, INPUT_DIM, OUTPUT_DIM)

    out = pointnet_forward(x, params)
    out = jax.block_until_ready(out)

    ref = reference_forward(x, params)
    assert out.shape == (NPOINT, K, OUTPUT_DIM), out.shape
    assert jnp.allclose(out, ref, atol=1e-4, rtol=1e-4), "mismatch vs reference"

    print("KERNEL_OK")
</pallas_src>

<mosaic_0001>
module attributes {stable_mosaic.version = 11 : i64} {
  func.func @pointnet_mlp_kernel(%arg0: i32, %arg1: memref<512x3xf32, #tpu.memory_space<vmem>>, %arg2: memref<3x64xf32, #tpu.memory_space<vmem>>, %arg3: memref<1x64xf32, #tpu.memory_space<vmem>>, %arg4: memref<64x128xf32, #tpu.memory_space<vmem>>, %arg5: memref<1x128xf32, #tpu.memory_space<vmem>>, %arg6: memref<128x128xf32, #tpu.memory_space<vmem>>, %arg7: memref<1x128xf32, #tpu.memory_space<vmem>>, %arg8: memref<512x128xf32, #tpu.memory_space<vmem>>) attributes {dimension_semantics = [#tpu.dimension_semantics<parallel>], iteration_bounds = array<i64: 2>, scalar_prefetch = 0 : i64, scratch_operands = 0 : i64, tpu.core_type = #tpu.core_type<tc>, window_params = [{transform_indices = @transform_0, window_bounds = array<i64: 512, 3>}, {pipeline_mode = #tpu.pipeline_mode<synchronous>, transform_indices = @transform_1, window_bounds = array<i64: 3, 64>}, {pipeline_mode = #tpu.pipeline_mode<synchronous>, transform_indices = @transform_2, window_bounds = array<i64: 1, 64>}, {pipeline_mode = #tpu.pipeline_mode<synchronous>, transform_indices = @transform_3, window_bounds = array<i64: 64, 128>}, {pipeline_mode = #tpu.pipeline_mode<synchronous>, transform_indices = @transform_4, window_bounds = array<i64: 1, 128>}, {pipeline_mode = #tpu.pipeline_mode<synchronous>, transform_indices = @transform_5, window_bounds = array<i64: 128, 128>}, {pipeline_mode = #tpu.pipeline_mode<synchronous>, transform_indices = @transform_6, window_bounds = array<i64: 1, 128>}, {transform_indices = @transform_7, window_bounds = array<i64: 512, 128>}]} {
    %c0 = arith.constant 0 : index
    %c0_0 = arith.constant 0 : index
    %0 = vector.load %arg1[%c0, %c0_0] : memref<512x3xf32, #tpu.memory_space<vmem>>, vector<512x3xf32>
    %c0_1 = arith.constant 0 : index
    %c0_2 = arith.constant 0 : index
    %1 = vector.load %arg2[%c0_1, %c0_2] : memref<3x64xf32, #tpu.memory_space<vmem>>, vector<3x64xf32>
    %c0_3 = arith.constant 0 : index
    %c0_4 = arith.constant 0 : index
    %2 = vector.load %arg3[%c0_3, %c0_4] : memref<1x64xf32, #tpu.memory_space<vmem>>, vector<1x64xf32>
    %c0_5 = arith.constant 0 : index
    %c0_6 = arith.constant 0 : index
    %3 = vector.load %arg5[%c0_5, %c0_6] : memref<1x128xf32, #tpu.memory_space<vmem>>, vector<1x128xf32>
    %c0_7 = arith.constant 0 : index
    %c0_8 = arith.constant 0 : index
    %4 = vector.load %arg7[%c0_7, %c0_8] : memref<1x128xf32, #tpu.memory_space<vmem>>, vector<1x128xf32>
    %5 = vector.extract_strided_slice %0 {offsets = [0, 0], sizes = [512, 1], strides = [1, 1]} : vector<512x3xf32> to vector<512x1xf32>
    %6 = vector.extract_strided_slice %1 {offsets = [0, 0], sizes = [1, 64], strides = [1, 1]} : vector<3x64xf32> to vector<1x64xf32>
    %7 = vector.broadcast %5 : vector<512x1xf32> to vector<512x64xf32>
    %8 = vector.broadcast %6 : vector<1x64xf32> to vector<512x64xf32>
    %9 = arith.mulf %7, %8 : vector<512x64xf32>
    %10 = vector.broadcast %2 : vector<1x64xf32> to vector<512x64xf32>
    %11 = arith.addf %10, %9 : vector<512x64xf32>
    %12 = vector.extract_strided_slice %0 {offsets = [0, 1], sizes = [512, 1], strides = [1, 1]} : vector<512x3xf32> to vector<512x1xf32>
    %13 = vector.extract_strided_slice %1 {offsets = [1, 0], sizes = [1, 64], strides = [1, 1]} : vector<3x64xf32> to vector<1x64xf32>
    %14 = vector.broadcast %12 : vector<512x1xf32> to vector<512x64xf32>
    %15 = vector.broadcast %13 : vector<1x64xf32> to vector<512x64xf32>
    %16 = arith.mulf %14, %15 : vector<512x64xf32>
    %17 = arith.addf %11, %16 : vector<512x64xf32>
    %18 = vector.extract_strided_slice %0 {offsets = [0, 2], sizes = [512, 1], strides = [1, 1]} : vector<512x3xf32> to vector<512x1xf32>
    %19 = vector.extract_strided_slice %1 {offsets = [2, 0], sizes = [1, 64], strides = [1, 1]} : vector<3x64xf32> to vector<1x64xf32>
    %20 = vector.broadcast %18 : vector<512x1xf32> to vector<512x64xf32>
    %21 = vector.broadcast %19 : vector<1x64xf32> to vector<512x64xf32>
    %22 = arith.mulf %20, %21 : vector<512x64xf32>
    %23 = arith.addf %17, %22 : vector<512x64xf32>
    %cst = arith.constant 0.000000e+00 : f32
    %24 = vector.broadcast %cst : f32 to vector<512x64xf32>
    %25 = arith.maximumf %23, %24 : vector<512x64xf32>
    %c0_9 = arith.constant 0 : index
    %c0_10 = arith.constant 0 : index
    %26 = vector.load %arg4[%c0_9, %c0_10] : memref<64x128xf32, #tpu.memory_space<vmem>>, vector<64x128xf32>
    %cst_11 = arith.constant dense<0.000000e+00> : vector<512x128xf32>
    %27 = tpu.matmul %25, %26, %cst_11 {dimension_numbers = #tpu.dot_dimension_numbers<[1], [0], [0], [1], [0, 0, 1, 1], [], []>} : vector<512x64xf32>, vector<64x128xf32>, vector<512x128xf32> -> vector<512x128xf32>
    %28 = vector.broadcast %3 : vector<1x128xf32> to vector<512x128xf32>
    %29 = arith.addf %27, %28 : vector<512x128xf32>
    %cst_12 = arith.constant 0.000000e+00 : f32
    %30 = vector.broadcast %cst_12 : f32 to vector<512x128xf32>
    %31 = arith.maximumf %29, %30 : vector<512x128xf32>
    %c0_13 = arith.constant 0 : index
    %c0_14 = arith.constant 0 : index
    %32 = vector.load %arg6[%c0_13, %c0_14] : memref<128x128xf32, #tpu.memory_space<vmem>>, vector<128x128xf32>
    %cst_15 = arith.constant dense<0.000000e+00> : vector<512x128xf32>
    %33 = tpu.matmul %31, %32, %cst_15 {dimension_numbers = #tpu.dot_dimension_numbers<[1], [0], [0], [1], [0, 0, 1, 1], [], []>} : vector<512x128xf32>, vector<128x128xf32>, vector<512x128xf32> -> vector<512x128xf32>
    %34 = vector.broadcast %4 : vector<1x128xf32> to vector<512x128xf32>
    %35 = arith.addf %33, %34 : vector<512x128xf32>
    %c0_16 = arith.constant 0 : index
    %c0_17 = arith.constant 0 : index
    %36 = vector.load %arg8[%c0_16, %c0_17] : memref<512x128xf32, #tpu.memory_space<vmem>>, vector<512x128xf32>
    tpu.vector_store %arg8[%c0_16, %c0_17], %35 {strides = array<i32>} : memref<512x128xf32, #tpu.memory_space<vmem>>, vector<512x128xf32>,
    return
  }
  func.func @transform_0(%arg0: i32) -> (i32, i32) {
    %c0_i32 = arith.constant 0 : i32
    %c0_i32_0 = arith.constant 0 : i32
    return %arg0, %c0_i32 : i32, i32
  }
  func.func @transform_1(%arg0: i32) -> (i32, i32) {
    %c0_i32 = arith.constant 0 : i32
    %c0_i32_0 = arith.constant 0 : i32
    %c0_i32_1 = arith.constant 0 : i32
    return %c0_i32, %c0_i32_0 : i32, i32
  }
  func.func @transform_2(%arg0: i32) -> (i32, i32) {
    %c0_i32 = arith.constant 0 : i32
    %c0_i32_0 = arith.constant 0 : i32
    %c0_i32_1 = arith.constant 0 : i32
    return %c0_i32, %c0_i32_0 : i32, i32
  }
  func.func @transform_3(%arg0: i32) -> (i32, i32) {
    %c0_i32 = arith.constant 0 : i32
    %c0_i32_0 = arith.constant 0 : i32
    %c0_i32_1 = arith.constant 0 : i32
    return %c0_i32, %c0_i32_0 : i32, i32
  }
  func.func @transform_4(%arg0: i32) -> (i32, i32) {
    %c0_i32 = arith.constant 0 : i32
    %c0_i32_0 = arith.constant 0 : i32
    %c0_i32_1 = arith.constant 0 : i32
    return %c0_i32, %c0_i32_0 : i32, i32
  }
  func.func @transform_5(%arg0: i32) -> (i32, i32) {
    %c0_i32 = arith.constant 0 : i32
    %c0_i32_0 = arith.constant 0 : i32
    %c0_i32_1 = arith.constant 0 : i32
    return %c0_i32, %c0_i32_0 : i32, i32
  }
  func.func @transform_6(%arg0: i32) -> (i32, i32) {
    %c0_i32 = arith.constant 0 : i32
    %c0_i32_0 = arith.constant 0 : i32
    %c0_i32_1 = arith.constant 0 : i32
    return %c0_i32, %c0_i32_0 : i32, i32
  }
  func.func @transform_7(%arg0: i32) -> (i32, i32) {
    %c0_i32 = arith.constant 0 : i32
    %c0_i32_0 = arith.constant 0 : i32
    return %arg0, %c0_i32 : i32, i32
  }
}

</mosaic_0001>

<llo_original>
// kernel: tpu_custom_call.1
$region0: #{tpu_custom_call.1}
  #allocation0 [shape = 'u32[]', space=smem, size = 0x4, offset = 0x4, fixed_abs, tag = 'smem constant byte address 0x4 - core index']
  #allocation1 [shape = 'u32[144,128]{1,0:T(1,128)}', space=vmem, size = 0x12000, scoped, tag = 'internal scratch']
  %s0 = inlined_call_operand.vmem [shape: f32[1024,3], index: 0, kind: input, shape index: {}]
  %s1 = inlined_call_operand.vmem [shape: f32[3,64], index: 1, kind: input, shape index: {}]
  %s2 = inlined_call_operand.vmem [shape: f32[1,64], index: 2, kind: input, shape index: {}]
  %s3 = inlined_call_operand.vmem [shape: f32[64,128], index: 3, kind: input, shape index: {}]
  %s4 = inlined_call_operand.vmem [shape: f32[1,128], index: 4, kind: input, shape index: {}]
  %s5 = inlined_call_operand.vmem [shape: f32[128,128], index: 5, kind: input, shape index: {}]
  %s6 = inlined_call_operand.vmem [shape: f32[1,128], index: 6, kind: input, shape index: {}]
  %s7 = inlined_call_operand.hbm [shape: f32[1024,128], index: 7, kind: output, shape index: {}]
  %s8 = sld [smem:[#allocation0]]
  $region61: #{tpu_custom_call.1} parent=0
    _
  %s10 = ssub.s32 1, %s8
  %s11 = scalar_select 0, %s10, %s8
  $region1: #{tpu_custom_call.1} parent=0
    #allocation2 [shape = 'u8[524288]{0}', space=vmem, size = 0x80000, scoped, tag = 'output window, operand 0']
    #allocation3 [shape = 's32[2]{0}', space=sflag, size = 0x8, scoped, tag = 'scoped memory for tpu_custom_call.1']
    %12 = vsyncpa [#allocation3], 0
    %s13 = scalar_lea.sflag [#allocation3], 1
    %14 = vsyncpa %s13, 0
    loop: start=0, step=1, limit=4
    $region2: #{tpu_custom_call.1} parent=1 // loop_pre_header
      _
    $region3: #{tpu_custom_call.1} parent=1 // loop_header
      %s16 = sphi 0, %s20
      %p17 = scmp.ge.s32.totalorder %s16, 4
      %s26 = sphi 0, %s28
      %s29 = sphi 0, %s26
      %s30 = sphi 0, %s29
      %s46 = sphi 0, %s30
      %s50 = sphi 0, %s50
      %s52 = sphi 0, %s50
      %s53 = sphi 0, %s52
      %s67 = sphi 0, %s53
      %s71 = sphi 0, %s71
      %s73 = sphi 0, %s71
      %s74 = sphi 0, %s73
      %s88 = sphi 0, %s74
      %s92 = sphi 0, %s92
      %s94 = sphi 0, %s92
      %s95 = sphi 0, %s94
      %s109 = sphi 0, %s95
      %s113 = sphi 0, %s113
      %s115 = sphi 0, %s113
      %s116 = sphi 0, %s115
      %s130 = sphi 0, %s116
      %s134 = sphi 0, %s134
      %s136 = sphi 0, %s134
      %s137 = sphi 0, %s136
      %s151 = sphi 0, %s137
      %s155 = sphi 0, %s155
      %s157 = sphi 0, %s155
      %s158 = sphi 0, %s157
      %s172 = sphi 0, %s158
      %s178 = sphi 0, %s180
      %s181 = sphi 0, %s178
      %s182 = sphi 0, %s181
      %s198 = sphi 0, %s182
    $region4: #{tpu_custom_call.1} parent=1 // loop_header_branch
      %19 = sbr.rel (%p17) target = $region8
    $region5: #{tpu_custom_call.1} parent=1 // loop_body
      %s21 = ssub.s32 %s16, 1
      %s22 = ssub.s32 %s16, 2
      %s23 = sadd.s32 %s16, 1
      %s24 = ssub.s32 %s16, %s23
      %p25 = scmp.eq.s32.totalorder %s24, 0
      %s27 = sadd.s32 %s26, 1
      %s28 = scalar_select %p25, %s26, %s27
      %p31 = pneg %p25
      %p32 = scmp.eq.s32.totalorder %s16, 1
      %p33 = por %p31, %p32
      %p34 = scmp.ne.s32.totalorder %s26, %s29
      %p35 = scmp.eq.s32.totalorder %s16, 0
      %p36 = por %p34, %p35
      %p37 = scmp.ne.s32.totalorder %s26, %s29
      %p38 = scmp.eq.s32.totalorder %s21, 1
      %p39 = por %p37, %p38
      %p40 = scmp.ne.s32.totalorder %s29, %s30
      %p41 = scmp.eq.s32.totalorder %s21, 0
      %p42 = por %p40, %p41
      %p43 = scmp.ne.s32.totalorder %s29, %s30
      %p44 = scmp.eq.s32.totalorder %s22, 1
      %p45 = por %p43, %p44
      %p47 = scmp.ne.s32.totalorder %s30, %s46
      %p48 = scmp.eq.s32.totalorder %s22, 0
      %p49 = por %p47, %p48
      %s51 = sadd.s32 %s50, 1
      %p54 = scmp.eq.s32.totalorder %s16, 1
      %p55 = scmp.ne.s32.totalorder %s50, %s52
      %p56 = scmp.eq.s32.totalorder %s16, 0
      %p57 = por %p55, %p56
      %p58 = scmp.ne.s32.totalorder %s50, %s52
      %p59 = scmp.eq.s32.totalorder %s21, 1
      %p60 = por %p58, %p59
      %p61 = scmp.ne.s32.totalorder %s52, %s53
      %p62 = scmp.eq.s32.totalorder %s21, 0
      %p63 = por %p61, %p62
      %p64 = scmp.ne.s32.totalorder %s52, %s53
      %p65 = scmp.eq.s32.totalorder %s22, 1
      %p66 = por %p64, %p65
      %p68 = scmp.ne.s32.totalorder %s53, %s67
      %p69 = scmp.eq.s32.totalorder %s22, 0
      %p70 = por %p68, %p69
      %s72 = sadd.s32 %s71, 1
      %p75 = scmp.eq.s32.totalorder %s16, 1
      %p76 = scmp.ne.s32.totalorder %s71, %s73
      %p77 = scmp.eq.s32.totalorder %s16, 0
      %p78 = por %p76, %p77
      %p79 = scmp.ne.s32.totalorder %s71, %s73
      %p80 = scmp.eq.s32.totalorder %s21, 1
      %p81 = por %p79, %p80
      %p82 = scmp.ne.s32.totalorder %s73, %s74
      %p83 = scmp.eq.s32.totalorder %s21, 0
      %p84 = por %p82, %p83
      %p85 = scmp.ne.s32.totalorder %s73, %s74
      %p86 = scmp.eq.s32.totalorder %s22, 1
      %p87 = por %p85, %p86
      %p89 = scmp.ne.s32.totalorder %s74, %s88
      %p90 = scmp.eq.s32.totalorder %s22, 0
      %p91 = por %p89, %p90
      %s93 = sadd.s32 %s92, 1
      %p96 = scmp.eq.s32.totalorder %s16, 1
      %p97 = scmp.ne.s32.totalorder %s92, %s94
      %p98 = scmp.eq.s32.totalorder %s16, 0
      %p99 = por %p97, %p98
      %p100 = scmp.ne.s32.totalorder %s92, %s94
      %p101 = scmp.eq.s32.totalorder %s21, 1
      %p102 = por %p100, %p101
      %p103 = scmp.ne.s32.totalorder %s94, %s95
      %p104 = scmp.eq.s32.totalorder %s21, 0
      %p105 = por %p103, %p104
      %p106 = scmp.ne.s32.totalorder %s94, %s95
      %p107 = scmp.eq.s32.totalorder %s22, 1
      %p108 = por %p106, %p107
      %p110 = scmp.ne.s32.totalorder %s95, %s109
      %p111 = scmp.eq.s32.totalorder %s22, 0
      %p112 = por %p110, %p111
      %s114 = sadd.s32 %s113, 1
      %p117 = scmp.eq.s32.totalorder %s16, 1
      %p118 = scmp.ne.s32.totalorder %s113, %s115
      %p119 = scmp.eq.s32.totalorder %s16, 0
      %p120 = por %p118, %p119
      %p121 = scmp.ne.s32.totalorder %s113, %s115
      %p122 = scmp.eq.s32.totalorder %s21, 1
      %p123 = por %p121, %p122
      %p124 = scmp.ne.s32.totalorder %s115, %s116
      %p125 = scmp.eq.s32.totalorder %s21, 0
      %p126 = por %p124, %p125
      %p127 = scmp.ne.s32.totalorder %s115, %s116
      %p128 = scmp.eq.s32.totalorder %s22, 1
      %p129 = por %p127, %p128
      %p131 = scmp.ne.s32.totalorder %s116, %s130
      %p132 = scmp.eq.s32.totalorder %s22, 0
      %p133 = por %p131, %p132
      %s135 = sadd.s32 %s134, 1
      %p138 = scmp.eq.s32.totalorder %s16, 1
      %p139 = scmp.ne.s32.totalorder %s134, %s136
      %p140 = scmp.eq.s32.totalorder %s16, 0
      %p141 = por %p139, %p140
      %p142 = scmp.ne.s32.totalorder %s134, %s136
      %p143 = scmp.eq.s32.totalorder %s21, 1
      %p144 = por %p142, %p143
      %p145 = scmp.ne.s32.totalorder %s136, %s137
      %p146 = scmp.eq.s32.totalorder %s21, 0
      %p147 = por %p145, %p146
      %p148 = scmp.ne.s32.totalorder %s136, %s137
      %p149 = scmp.eq.s32.totalorder %s22, 1
      %p150 = por %p148, %p149
      %p152 = scmp.ne.s32.totalorder %s137, %s151
      %p153 = scmp.eq.s32.totalorder %s22, 0
      %p154 = por %p152, %p153
      %s156 = sadd.s32 %s155, 1
      %p159 = scmp.eq.s32.totalorder %s16, 1
      %p160 = scmp.ne.s32.totalorder %s155, %s157
      %p161 = scmp.eq.s32.totalorder %s16, 0
      %p162 = por %p160, %p161
      %p163 = scmp.ne.s32.totalorder %s155, %s157
      %p164 = scmp.eq.s32.totalorder %s21, 1
      %p165 = por %p163, %p164
      %p166 = scmp.ne.s32.totalorder %s157, %s158
      %p167 = scmp.eq.s32.totalorder %s21, 0
      %p168 = por %p166, %p167
      %p169 = scmp.ne.s32.totalorder %s157, %s158
      %p170 = scmp.eq.s32.totalorder %s22, 1
      %p171 = por %p169, %p170
      %p173 = scmp.ne.s32.totalorder %s158, %s172
      %p174 = scmp.eq.s32.totalorder %s22, 0
      %p175 = por %p173, %p174
      %s176 = ssub.s32 %s16, %s23
      %p177 = scmp.eq.s32.totalorder %s176, 0
      %s179 = sadd.s32 %s178, 1
      %s180 = scalar_select %p177, %s178, %s179
      %p183 = pneg %p177
      %p184 = scmp.eq.s32.totalorder %s16, 1
      %p185 = por %p183, %p184
      %p186 = scmp.ne.s32.totalorder %s178, %s181
      %p187 = scmp.eq.s32.totalorder %s16, 0
      %p188 = por %p186, %p187
      %p189 = scmp.ne.s32.totalorder %s178, %s181
      %p190 = scmp.eq.s32.totalorder %s21, 1
      %p191 = por %p189, %p190
      %p192 = scmp.ne.s32.totalorder %s181, %s182
      %p193 = scmp.eq.s32.totalorder %s21, 0
      %p194 = por %p192, %p193
      %p195 = scmp.ne.s32.totalorder %s181, %s182
      %p196 = scmp.eq.s32.totalorder %s22, 1
      %p197 = por %p195, %p196
      %p199 = scmp.ne.s32.totalorder %s182, %s198
      %p200 = scmp.eq.s32.totalorder %s22, 0
      %p201 = por %p199, %p200
      %p202 = scmp.le.s32.totalorder 1, %s16
      %p203 = scmp.lt.s32.totalorder %s16, 3
      %p204 = pnand %p202, %p203
      %p205 = pneg %p204
      // Predicated region
      $region9: #{tpu_custom_call.1} parent=5 // pred_check
        _
      $region10: #{tpu_custom_call.1} parent=5 // pred_check_branch
        %207 = sbr.rel (%p204) target = $region12
      $region11: #{tpu_custom_call.1} parent=5 // pred_region
        %s208 = ssub.s32 %s16, 1
        // Predicated region
        $region13: #{tpu_custom_call.1} parent=11 // pred_check
          %p209 = pneg %p63
        $region14: #{tpu_custom_call.1} parent=11 // pred_check_branch
          %211 = sbr.rel (%p209) target = $region16
        $region15: #{tpu_custom_call.1} parent=11 // pred_region
          _
        $region16: #{tpu_custom_call.1} parent=11 // pred_fallthru
          _
        // Predicated region
        $region17: #{tpu_custom_call.1} parent=11 // pred_check
          %p212 = pneg %p84
        $region18: #{tpu_custom_call.1} parent=11 // pred_check_branch
          %214 = sbr.rel (%p212) target = $region20
        $region19: #{tpu_custom_call.1} parent=11 // pred_region
          _
        $region20: #{tpu_custom_call.1} parent=11 // pred_fallthru
          _
        // Predicated region
        $region21: #{tpu_custom_call.1} parent=11 // pred_check
          %p215 = pneg %p105
        $region22: #{tpu_custom_call.1} parent=11 // pred_check_branch
          %217 = sbr.rel (%p215) target = $region24
        $region23: #{tpu_custom_call.1} parent=11 // pred_region
          _
        $region24: #{tpu_custom_call.1} parent=11 // pred_fallthru
          _
        // Predicated region
        $region25: #{tpu_custom_call.1} parent=11 // pred_check
          %p218 = pneg %p126
        $region26: #{tpu_custom_call.1} parent=11 // pred_check_branch
          %220 = sbr.rel (%p218) target = $region28
        $region27: #{tpu_custom_call.1} parent=11 // pred_region
          _
        $region28: #{tpu_custom_call.1} parent=11 // pred_fallthru
          _
        // Predicated region
        $region29: #{tpu_custom_call.1} parent=11 // pred_check
          %p221 = pneg %p147
        $region30: #{tpu_custom_call.1} parent=11 // pred_check_branch
          %223 = sbr.rel (%p221) target = $region32
        $region31: #{tpu_custom_call.1} parent=11 // pred_region
          _
        $region32: #{tpu_custom_call.1} parent=11 // pred_fallthru
          _
        // Predicated region
        $region33: #{tpu_custom_call.1} parent=11 // pred_check
          %p224 = pneg %p168
        $region34: #{tpu_custom_call.1} parent=11 // pred_check_branch
          %226 = sbr.rel (%p224) target = $region36
        $region35: #{tpu_custom_call.1} parent=11 // pred_region
          _
        $region36: #{tpu_custom_call.1} parent=11 // pred_fallthru
          _
      $region12: #{tpu_custom_call.1} parent=5 // pred_fallthru
        _
      %p227 = scmp.lt.s32.totalorder %s16, 2
      // Predicated region
      $region37: #{tpu_custom_call.1} parent=5 // pred_check
        %p228 = pneg %p227
      $region38: #{tpu_custom_call.1} parent=5 // pred_check_branch
        %230 = sbr.rel (%p228) target = $region40
      $region39: #{tpu_custom_call.1} parent=5 // pred_region
        // Predicated region
        $region41: #{tpu_custom_call.1} parent=39 // pred_check
          %p231 = pneg %p36
        $region42: #{tpu_custom_call.1} parent=39 // pred_check_branch
          %233 = sbr.rel (%p231) target = $region44
        $region43: #{tpu_custom_call.1} parent=39 // pred_region
          %s234 = smul.u32 64, %s16
          %p235 = scmp.lt.s32.totalorder %s234, 127
          %s236 = scalar_select %p235, %s234, 127
          %s237 = smul.addr %s236, 8
          %s238 = scalar_lea.vmem %s0, %s237
          %s239 = smul.u32 64, %s16
        $region44: #{tpu_custom_call.1} parent=39 // pred_fallthru
          _
      $region40: #{tpu_custom_call.1} parent=5 // pred_fallthru
        _
      %p240 = scmp.le.s32.totalorder 1, %s16
      %p241 = scmp.lt.s32.totalorder %s16, 3
      %p242 = pnand %p240, %p241
      %p243 = pneg %p242
      // Predicated region
      $region45: #{tpu_custom_call.1} parent=5 // pred_check
        _
      $region46: #{tpu_custom_call.1} parent=5 // pred_check_branch
        %245 = sbr.rel (%p242) target = $region48
      $region47: #{tpu_custom_call.1} parent=5 // pred_region
        %s246 = ssub.s32 %s16, 1
        %s247 = smul.u32 64, %s21
        %p248 = scmp.lt.s32.totalorder %s247, 127
        %s249 = scalar_select %p248, %s247, 127
        %s250 = smul.addr %s249, 8
        %s251 = scalar_lea.vmem %s0, %s250
        %p252 = pneg %p42
        %p253 = pneg %p39
        %p254 = pneg %p63
        %p255 = pneg %p60
        %p256 = pneg %p84
        %p257 = pneg %p81
        %p258 = pneg %p105
        %p259 = pneg %p102
        %p260 = pneg %p126
        %p261 = pneg %p123
        %p262 = pneg %p147
        %p263 = pneg %p144
        %p264 = pneg %p168
        %p265 = pneg %p165
        %p266 = pneg %p194
        %p267 = pneg %p191
        %s268 = sand.u32 %s181, 1
        %s269 = scalar_lea.sflag [#allocation3], %s268
        %s270 = sand.u32 %s181, 1
        %s271 = smul.addr %s270, 512
        %s272 = scalar_lea.vmem [#allocation2], %s271
        %s273 = smul.u32 64, %s21
        %p274 = scmp.lt.s32.totalorder %s273, 127
        %s275 = scalar_select %p274, %s273, 127
        %s276 = smul.addr %s275, 8
        %s277 = scalar_lea.vmem %s0, %s276
        %s278 = smul.u32 64, %s21
        %s279 = smul.u32 64, %s21
        %v280 = vld [vmem:[%s277] sm:$0xff]
        %v281 = vld [vmem:[%s277 + $0x8] sm:$0xff]
        %v282 = vld [vmem:[%s277 + $0x10] sm:$0xff]
        %v283 = vld [vmem:[%s277 + $0x18] sm:$0xff]
        %v284 = vld [vmem:[%s277 + $0x20] sm:$0xff]
        %v285 = vld [vmem:[%s277 + $0x28] sm:$0xff]
        %v286 = vld [vmem:[%s277 + $0x30] sm:$0xff]
        %v287 = vld [vmem:[%s277 + $0x38] sm:$0xff]
        %v288 = vld [vmem:[%s277 + $0x40] sm:$0xff]
        %v289 = vld [vmem:[%s277 + $0x48] sm:$0xff]
        %v290 = vld [vmem:[%s277 + $0x50] sm:$0xff]
        %v291 = vld [vmem:[%s277 + $0x58] sm:$0xff]
        %v292 = vld [vmem:[%s277 + $0x60] sm:$0xff]
        %v293 = vld [vmem:[%s277 + $0x68] sm:$0xff]
        %v294 = vld [vmem:[%s277 + $0x70] sm:$0xff]
        %v295 = vld [vmem:[%s277 + $0x78] sm:$0xff]
        %v296 = vld [vmem:[%s277 + $0x80] sm:$0xff]
        %v297 = vld [vmem:[%s277 + $0x88] sm:$0xff]
        %v298 = vld [vmem:[%s277 + $0x90] sm:$0xff]
        %v299 = vld [vmem:[%s277 + $0x98] sm:$0xff]
        %v300 = vld [vmem:[%s277 + $0xa0] sm:$0xff]
        %v301 = vld [vmem:[%s277 + $0xa8] sm:$0xff]
        %v302 = vld [vmem:[%s277 + $0xb0] sm:$0xff]
        %v303 = vld [vmem:[%s277 + $0xb8] sm:$0xff]
        %v304 = vld [vmem:[%s277 + $0xc0] sm:$0xff]
        %v305 = vld [vmem:[%s277 + $0xc8] sm:$0xff]
        %v306 = vld [vmem:[%s277 + $0xd0] sm:$0xff]
        %v307 = vld [vmem:[%s277 + $0xd8] sm:$0xff]
        %v308 = vld [vmem:[%s277 + $0xe0] sm:$0xff]
        %v309 = vld [vmem:[%s277 + $0xe8] sm:$0xff]
        %v310 = vld [vmem:[%s277 + $0xf0] sm:$0xff]
        %v311 = vld [vmem:[%s277 + $0xf8] sm:$0xff]
        %v312 = vld [vmem:[%s277 + $0x100] sm:$0xff]
        %v313 = vld [vmem:[%s277 + $0x108] sm:$0xff]
        %v314 = vld [vmem:[%s277 + $0x110] sm:$0xff]
        %v315 = vld [vmem:[%s277 + $0x118] sm:$0xff]
        %v316 = vld [vmem:[%s277 + $0x120] sm:$0xff]
        %v317 = vld [vmem:[%s277 + $0x128] sm:$0xff]
        %v318 = vld [vmem:[%s277 + $0x130] sm:$0xff]
        %v319 = vld [vmem:[%s277 + $0x138] sm:$0xff]
        %v320 = vld [vmem:[%s277 + $0x140] sm:$0xff]
        %v321 = vld [vmem:[%s277 + $0x148] sm:$0xff]
        %v322 = vld [vmem:[%s277 + $0x150] sm:$0xff]
        %v323 = vld [vmem:[%s277 + $0x158] sm:$0xff]
        %v324 = vld [vmem:[%s277 + $0x160] sm:$0xff]
        %v325 = vld [vmem:[%s277 + $0x168] sm:$0xff]
        %v326 = vld [vmem:[%s277 + $0x170] sm:$0xff]
        %v327 = vld [vmem:[%s277 + $0x178] sm:$0xff]
        %v328 = vld [vmem:[%s277 + $0x180] sm:$0xff]
        %v329 = vld [vmem:[%s277 + $0x188] sm:$0xff]
        %v330 = vld [vmem:[%s277 + $0x190] sm:$0xff]
        %v331 = vld [vmem:[%s277 + $0x198] sm:$0xff]
        %v332 = vld [vmem:[%s277 + $0x1a0] sm:$0xff]
        %v333 = vld [vmem:[%s277 + $0x1a8] sm:$0xff]
        %v334 = vld [vmem:[%s277 + $0x1b0] sm:$0xff]
        %v335 = vld [vmem:[%s277 + $0x1b8] sm:$0xff]
        %v336 = vld [vmem:[%s277 + $0x1c0] sm:$0xff]
        %v337 = vld [vmem:[%s277 + $0x1c8] sm:$0xff]
        %v338 = vld [vmem:[%s277 + $0x1d0] sm:$0xff]
        %v339 = vld [vmem:[%s277 + $0x1d8] sm:$0xff]
        %v340 = vld [vmem:[%s277 + $0x1e0] sm:$0xff]
        %v341 = vld [vmem:[%s277 + $0x1e8] sm:$0xff]
        %v342 = vld [vmem:[%s277 + $0x1f0] sm:$0xff]
        %v343 = vld [vmem:[%s277 + $0x1f8] sm:$0xff]
        %v344 = vld [vmem:[%s1] sm:$0x7]
        %v345 = vld [vmem:[%s2] sm:$0x1]
        %v346 = vld [vmem:[%s4] sm:$0x1]
        %v347 = vld [vmem:[%s6] sm:$0x1]
        %349 = vset.pattern.permute.xlu0 0
        %350 = vperm.xlu0 %349, %v280
        %v351 = vpop.permute.xlu0 %350
        %354 = vset.pattern.permute.xlu0 0
        %355 = vperm.xlu0 %354, %v281
        %v356 = vpop.permute.xlu0 %355
        %359 = vset.pattern.permute.xlu0 0
        %360 = vperm.xlu0 %359, %v282
        %v361 = vpop.permute.xlu0 %360
        %364 = vset.pattern.permute.xlu0 0
        %365 = vperm.xlu0 %364, %v283
        %v366 = vpop.permute.xlu0 %365
        %369 = vset.pattern.permute.xlu0 0
        %370 = vperm.xlu0 %369, %v284
        %v371 = vpop.permute.xlu0 %370
        %374 = vset.pattern.permute.xlu0 0
        %375 = vperm.xlu0 %374, %v285
        %v376 = vpop.permute.xlu0 %375
        %379 = vset.pattern.permute.xlu0 0
        %380 = vperm.xlu0 %379, %v286
        %v381 = vpop.permute.xlu0 %380
        %384 = vset.pattern.permute.xlu0 0
        %385 = vperm.xlu0 %384, %v287
        %v386 = vpop.permute.xlu0 %385
        %389 = vset.pattern.permute.xlu0 0
        %390 = vperm.xlu0 %389, %v288
        %v391 = vpop.permute.xlu0 %390
        %394 = vset.pattern.permute.xlu0 0
        %395 = vperm.xlu0 %394, %v289
        %v396 = vpop.permute.xlu0 %395
        %399 = vset.pattern.permute.xlu0 0
        %400 = vperm.xlu0 %399, %v290
        %v401 = vpop.permute.xlu0 %400
        %404 = vset.pattern.permute.xlu0 0
        %405 = vperm.xlu0 %404, %v291
        %v406 = vpop.permute.xlu0 %405
        %409 = vset.pattern.permute.xlu0 0
        %410 = vperm.xlu0 %409, %v292
        %v411 = vpop.permute.xlu0 %410
        %414 = vset.pattern.permute.xlu0 0
        %415 = vperm.xlu0 %414, %v293
        %v416 = vpop.permute.xlu0 %415
        %419 = vset.pattern.permute.xlu0 0
        %420 = vperm.xlu0 %419, %v294
        %v421 = vpop.permute.xlu0 %420
        %424 = vset.pattern.permute.xlu0 0
        %425 = vperm.xlu0 %424, %v295
        %v426 = vpop.permute.xlu0 %425
        %429 = vset.pattern.permute.xlu0 0
        %430 = vperm.xlu0 %429, %v296
        %v431 = vpop.permute.xlu0 %430
        %434 = vset.pattern.permute.xlu0 0
        %435 = vperm.xlu0 %434, %v297
        %v436 = vpop.permute.xlu0 %435
        %439 = vset.pattern.permute.xlu0 0
        %440 = vperm.xlu0 %439, %v298
        %v441 = vpop.permute.xlu0 %440
        %444 = vset.pattern.permute.xlu0 0
        %445 = vperm.xlu0 %444, %v299
        %v446 = vpop.permute.xlu0 %445
        %449 = vset.pattern.permute.xlu0 0
        %450 = vperm.xlu0 %449, %v300
        %v451 = vpop.permute.xlu0 %450
        %454 = vset.pattern.permute.xlu0 0
        %455 = vperm.xlu0 %454, %v301
        %v456 = vpop.permute.xlu0 %455
        %459 = vset.pattern.permute.xlu0 0
        %460 = vperm.xlu0 %459, %v302
        %v461 = vpop.permute.xlu0 %460
        %464 = vset.pattern.permute.xlu0 0
        %465 = vperm.xlu0 %464, %v303
        %v466 = vpop.permute.xlu0 %465
        %469 = vset.pattern.permute.xlu0 0
        %470 = vperm.xlu0 %469, %v304
        %v471 = vpop.permute.xlu0 %470
        %474 = vset.pattern.permute.xlu0 0
        %475 = vperm.xlu0 %474, %v305
        %v476 = vpop.permute.xlu0 %475
        %479 = vset.pattern.permute.xlu0 0
        %480 = vperm.xlu0 %479, %v306
        %v481 = vpop.permute.xlu0 %480
        %484 = vset.pattern.permute.xlu0 0
        %485 = vperm.xlu0 %484, %v307
        %v486 = vpop.permute.xlu0 %485
        %489 = vset.pattern.permute.xlu0 0
        %490 = vperm.xlu0 %489, %v308
        %v491 = vpop.permute.xlu0 %490
        %494 = vset.pattern.permute.xlu0 0
        %495 = vperm.xlu0 %494, %v309
        %v496 = vpop.permute.xlu0 %495
        %499 = vset.pattern.permute.xlu0 0
        %500 = vperm.xlu0 %499, %v310
        %v501 = vpop.permute.xlu0 %500
        %504 = vset.pattern.permute.xlu0 0
        %505 = vperm.xlu0 %504, %v311
        %v506 = vpop.permute.xlu0 %505
        %509 = vset.pattern.permute.xlu0 0
        %510 = vperm.xlu0 %509, %v312
        %v511 = vpop.permute.xlu0 %510
        %514 = vset.pattern.permute.xlu0 0
        %515 = vperm.xlu0 %514, %v313
        %v516 = vpop.permute.xlu0 %515
        %519 = vset.pattern.permute.xlu0 0
        %520 = vperm.xlu0 %519, %v314
        %v521 = vpop.permute.xlu0 %520
        %524 = vset.pattern.permute.xlu0 0
        %525 = vperm.xlu0 %524, %v315
        %v526 = vpop.permute.xlu0 %525
        %529 = vset.pattern.permute.xlu0 0
        %530 = vperm.xlu0 %529, %v316
        %v531 = vpop.permute.xlu0 %530
        %534 = vset.pattern.permute.xlu0 0
        %535 = vperm.xlu0 %534, %v317
        %v536 = vpop.permute.xlu0 %535
        %539 = vset.pattern.permute.xlu0 0
        %540 = vperm.xlu0 %539, %v318
        %v541 = vpop.permute.xlu0 %540
        %544 = vset.pattern.permute.xlu0 0
        %545 = vperm.xlu0 %544, %v319
        %v546 = vpop.permute.xlu0 %545
        %549 = vset.pattern.permute.xlu0 0
        %550 = vperm.xlu0 %549, %v320
        %v551 = vpop.permute.xlu0 %550
        %554 = vset.pattern.permute.xlu0 0
        %555 = vperm.xlu0 %554, %v321
        %v556 = vpop.permute.xlu0 %555
        %559 = vset.pattern.permute.xlu0 0
        %560 = vperm.xlu0 %559, %v322
        %v561 = vpop.permute.xlu0 %560
        %564 = vset.pattern.permute.xlu0 0
        %565 = vperm.xlu0 %564, %v323
        %v566 = vpop.permute.xlu0 %565
        %569 = vset.pattern.permute.xlu0 0
        %570 = vperm.xlu0 %569, %v324
        %v571 = vpop.permute.xlu0 %570
        %574 = vset.pattern.permute.xlu0 0
        %575 = vperm.xlu0 %574, %v325
        %v576 = vpop.permute.xlu0 %575
        %579 = vset.pattern.permute.xlu0 0
        %580 = vperm.xlu0 %579, %v326
        %v581 = vpop.permute.xlu0 %580
        %584 = vset.pattern.permute.xlu0 0
        %585 = vperm.xlu0 %584, %v327
        %v586 = vpop.permute.xlu0 %585
        %589 = vset.pattern.permute.xlu0 0
        %590 = vperm.xlu0 %589, %v328
        %v591 = vpop.permute.xlu0 %590
        %594 = vset.pattern.permute.xlu0 0
        %595 = vperm.xlu0 %594, %v329
        %v596 = vpop.permute.xlu0 %595
        %599 = vset.pattern.permute.xlu0 0
        %600 = vperm.xlu0 %599, %v330
        %v601 = vpop.permute.xlu0 %600
        %604 = vset.pattern.permute.xlu0 0
        %605 = vperm.xlu0 %604, %v331
        %v606 = vpop.permute.xlu0 %605
        %609 = vset.pattern.permute.xlu0 0
        %610 = vperm.xlu0 %609, %v332
        %v611 = vpop.permute.xlu0 %610
        %614 = vset.pattern.permute.xlu0 0
        %615 = vperm.xlu0 %614, %v333
        %v616 = vpop.permute.xlu0 %615
        %619 = vset.pattern.permute.xlu0 0
        %620 = vperm.xlu0 %619, %v334
        %v621 = vpop.permute.xlu0 %620
        %624 = vset.pattern.permute.xlu0 0
        %625 = vperm.xlu0 %624, %v335
        %v626 = vpop.permute.xlu0 %625
        %629 = vset.pattern.permute.xlu0 0
        %630 = vperm.xlu0 %629, %v336
        %v631 = vpop.permute.xlu0 %630
        %634 = vset.pattern.permute.xlu0 0
        %635 = vperm.xlu0 %634, %v337
        %v636 = vpop.permute.xlu0 %635
        %639 = vset.pattern.permute.xlu0 0
        %640 = vperm.xlu0 %639, %v338
        %v641 = vpop.permute.xlu0 %640
        %644 = vset.pattern.permute.xlu0 0
        %645 = vperm.xlu0 %644, %v339
        %v646 = vpop.permute.xlu0 %645
        %649 = vset.pattern.permute.xlu0 0
        %650 = vperm.xlu0 %649, %v340
        %v651 = vpop.permute.xlu0 %650
        %654 = vset.pattern.permute.xlu0 0
        %655 = vperm.xlu0 %654, %v341
        %v656 = vpop.permute.xlu0 %655
        %659 = vset.pattern.permute.xlu0 0
        %660 = vperm.xlu0 %659, %v342
        %v661 = vpop.permute.xlu0 %660
        %664 = vset.pattern.permute.xlu0 0
        %665 = vperm.xlu0 %664, %v343
        %v666 = vpop.permute.xlu0 %665
        %v668 = vlaneseq
        %v669 = vshrl.u32 %v668, 7
        %v670 = vsub.s32 0, %v669
        %v671 = vrot.slane %v344, %v670
        %v672 = vmul.f32 %v351, %v671
        %v673 = vmul.f32 %v356, %v671
        %v674 = vmul.f32 %v361, %v671
        %v675 = vmul.f32 %v366, %v671
        %v676 = vmul.f32 %v371, %v671
        %v677 = vmul.f32 %v376, %v671
        %v678 = vmul.f32 %v381, %v671
        %v679 = vmul.f32 %v386, %v671
        %v680 = vmul.f32 %v391, %v671
        %v681 = vmul.f32 %v396, %v671
        %v682 = vmul.f32 %v401, %v671
        %v683 = vmul.f32 %v406, %v671
        %v684 = vmul.f32 %v411, %v671
        %v685 = vmul.f32 %v416, %v671
        %v686 = vmul.f32 %v421, %v671
        %v687 = vmul.f32 %v426, %v671
        %v688 = vmul.f32 %v431, %v671
        %v689 = vmul.f32 %v436, %v671
        %v690 = vmul.f32 %v441, %v671
        %v691 = vmul.f32 %v446, %v671
        %v692 = vmul.f32 %v451, %v671
        %v693 = vmul.f32 %v456, %v671
        %v694 = vmul.f32 %v461, %v671
        %v695 = vmul.f32 %v466, %v671
        %v696 = vmul.f32 %v471, %v671
        %v697 = vmul.f32 %v476, %v671
        %v698 = vmul.f32 %v481, %v671
        %v699 = vmul.f32 %v486, %v671
        %v700 = vmul.f32 %v491, %v671
        %v701 = vmul.f32 %v496, %v671
        %v702 = vmul.f32 %v501, %v671
        %v703 = vmul.f32 %v506, %v671
        %v704 = vmul.f32 %v511, %v671
        %v705 = vmul.f32 %v516, %v671
        %v706 = vmul.f32 %v521, %v671
        %v707 = vmul.f32 %v526, %v671
        %v708 = vmul.f32 %v531, %v671
        %v709 = vmul.f32 %v536, %v671
        %v710 = vmul.f32 %v541, %v671
        %v711 = vmul.f32 %v546, %v671
        %v712 = vmul.f32 %v551, %v671
        %v713 = vmul.f32 %v556, %v671
        %v714 = vmul.f32 %v561, %v671
        %v715 = vmul.f32 %v566, %v671
        %v716 = vmul.f32 %v571, %v671
        %v717 = vmul.f32 %v576, %v671
        %v718 = vmul.f32 %v581, %v671
        %v719 = vmul.f32 %v586, %v671
        %v720 = vmul.f32 %v591, %v671
        %v721 = vmul.f32 %v596, %v671
        %v722 = vmul.f32 %v601, %v671
        %v723 = vmul.f32 %v606, %v671
        %v724 = vmul.f32 %v611, %v671
        %v725 = vmul.f32 %v616, %v671
        %v726 = vmul.f32 %v621, %v671
        %v727 = vmul.f32 %v626, %v671
        %v728 = vmul.f32 %v631, %v671
        %v729 = vmul.f32 %v636, %v671
        %v730 = vmul.f32 %v641, %v671
        %v731 = vmul.f32 %v646, %v671
        %v732 = vmul.f32 %v651, %v671
        %v733 = vmul.f32 %v656, %v671
        %v734 = vmul.f32 %v661, %v671
        %v735 = vmul.f32 %v666, %v671
        %v737 = vlaneseq
        %v738 = vshrl.u32 %v737, 7
        %v739 = vsub.s32 0, %v738
        %v740 = vrot.slane %v345, %v739
        %v742 = vadd.f32 %v740, %v672
        %v743 = vadd.f32 %v740, %v673
        %v744 = vadd.f32 %v740, %v674
        %v745 = vadd.f32 %v740, %v675
        %v746 = vadd.f32 %v740, %v676
        %v747 = vadd.f32 %v740, %v677
        %v748 = vadd.f32 %v740, %v678
        %v749 = vadd.f32 %v740, %v679
        %v750 = vadd.f32 %v740, %v680
        %v751 = vadd.f32 %v740, %v681
        %v752 = vadd.f32 %v740, %v682
        %v753 = vadd.f32 %v740, %v683
        %v754 = vadd.f32 %v740, %v684
        %v755 = vadd.f32 %v740, %v685
        %v756 = vadd.f32 %v740, %v686
        %v757 = vadd.f32 %v740, %v687
        %v758 = vadd.f32 %v740, %v688
        %v759 = vadd.f32 %v740, %v689
        %v760 = vadd.f32 %v740, %v690
        %v761 = vadd.f32 %v740, %v691
        %v762 = vadd.f32 %v740, %v692
        %v763 = vadd.f32 %v740, %v693
        %v764 = vadd.f32 %v740, %v694
        %v765 = vadd.f32 %v740, %v695
        %v766 = vadd.f32 %v740, %v696
        %v767 = vadd.f32 %v740, %v697
        %v768 = vadd.f32 %v740, %v698
        %v769 = vadd.f32 %v740, %v699
        %v770 = vadd.f32 %v740, %v700
        %v771 = vadd.f32 %v740, %v701
        %v772 = vadd.f32 %v740, %v702
        %v773 = vadd.f32 %v740, %v703
        %v774 = vadd.f32 %v740, %v704
        %v775 = vadd.f32 %v740, %v705
        %v776 = vadd.f32 %v740, %v706
        %v777 = vadd.f32 %v740, %v707
        %v778 = vadd.f32 %v740, %v708
        %v779 = vadd.f32 %v740, %v709
        %v780 = vadd.f32 %v740, %v710
        %v781 = vadd.f32 %v740, %v711
        %v782 = vadd.f32 %v740, %v712
        %v783 = vadd.f32 %v740, %v713
        %v784 = vadd.f32 %v740, %v714
        %v785 = vadd.f32 %v740, %v715
        %v786 = vadd.f32 %v740, %v716
        %v787 = vadd.f32 %v740, %v717
        %v788 = vadd.f32 %v740, %v718
        %v789 = vadd.f32 %v740, %v719
        %v790 = vadd.f32 %v740, %v720
        %v791 = vadd.f32 %v740, %v721
        %v792 = vadd.f32 %v740, %v722
        %v793 = vadd.f32 %v740, %v723
        %v794 = vadd.f32 %v740, %v724
        %v795 = vadd.f32 %v740, %v725
        %v796 = vadd.f32 %v740, %v726
        %v797 = vadd.f32 %v740, %v727
        %v798 = vadd.f32 %v740, %v728
        %v799 = vadd.f32 %v740, %v729
        %v800 = vadd.f32 %v740, %v730
        %v801 = vadd.f32 %v740, %v731
        %v802 = vadd.f32 %v740, %v732
        %v803 = vadd.f32 %v740, %v733
        %v804 = vadd.f32 %v740, %v734
        %v805 = vadd.f32 %v740, %v735
        %806 = vset.pattern.permute.xlu0 1
        %807 = vperm.xlu0 %806, %v280
        %v808 = vpop.permute.xlu0 %807
        %810 = vset.pattern.permute.xlu0 1
        %811 = vperm.xlu0 %810, %v281
        %v812 = vpop.permute.xlu0 %811
        %814 = vset.pattern.permute.xlu0 1
        %815 = vperm.xlu0 %814, %v282
        %v816 = vpop.permute.xlu0 %815
        %818 = vset.pattern.permute.xlu0 1
        %819 = vperm.xlu0 %818, %v283
        %v820 = vpop.permute.xlu0 %819
        %822 = vset.pattern.permute.xlu0 1
        %823 = vperm.xlu0 %822, %v284
        %v824 = vpop.permute.xlu0 %823
        %826 = vset.pattern.permute.xlu0 1
        %827 = vperm.xlu0 %826, %v285
        %v828 = vpop.permute.xlu0 %827
        %830 = vset.pattern.permute.xlu0 1
        %831 = vperm.xlu0 %830, %v286
        %v832 = vpop.permute.xlu0 %831
        %834 = vset.pattern.permute.xlu0 1
        %835 = vperm.xlu0 %834, %v287
        %v836 = vpop.permute.xlu0 %835
        %838 = vset.pattern.permute.xlu0 1
        %839 = vperm.xlu0 %838, %v288
        %v840 = vpop.permute.xlu0 %839
        %842 = vset.pattern.permute.xlu0 1
        %843 = vperm.xlu0 %842, %v289
        %v844 = vpop.permute.xlu0 %843
        %846 = vset.pattern.permute.xlu0 1
        %847 = vperm.xlu0 %846, %v290
        %v848 = vpop.permute.xlu0 %847
        %850 = vset.pattern.permute.xlu0 1
        %851 = vperm.xlu0 %850, %v291
        %v852 = vpop.permute.xlu0 %851
        %854 = vset.pattern.permute.xlu0 1
        %855 = vperm.xlu0 %854, %v292
        %v856 = vpop.permute.xlu0 %855
        %858 = vset.pattern.permute.xlu0 1
        %859 = vperm.xlu0 %858, %v293
        %v860 = vpop.permute.xlu0 %859
        %862 = vset.pattern.permute.xlu0 1
        %863 = vperm.xlu0 %862, %v294
        %v864 = vpop.permute.xlu0 %863
        %866 = vset.pattern.permute.xlu0 1
        %867 = vperm.xlu0 %866, %v295
        %v868 = vpop.permute.xlu0 %867
        %870 = vset.pattern.permute.xlu0 1
        %871 = vperm.xlu0 %870, %v296
        %v872 = vpop.permute.xlu0 %871
        %874 = vset.pattern.permute.xlu0 1
        %875 = vperm.xlu0 %874, %v297
        %v876 = vpop.permute.xlu0 %875
        %878 = vset.pattern.permute.xlu0 1
        %879 = vperm.xlu0 %878, %v298
        %v880 = vpop.permute.xlu0 %879
        %882 = vset.pattern.permute.xlu0 1
        %883 = vperm.xlu0 %882, %v299
        %v884 = vpop.permute.xlu0 %883
        %886 = vset.pattern.permute.xlu0 1
        %887 = vperm.xlu0 %886, %v300
        %v888 = vpop.permute.xlu0 %887
        %890 = vset.pattern.permute.xlu0 1
        %891 = vperm.xlu0 %890, %v301
        %v892 = vpop.permute.xlu0 %891
        %894 = vset.pattern.permute.xlu0 1
        %895 = vperm.xlu0 %894, %v302
        %v896 = vpop.permute.xlu0 %895
        %898 = vset.pattern.permute.xlu0 1
        %899 = vperm.xlu0 %898, %v303
        %v900 = vpop.permute.xlu0 %899
        %902 = vset.pattern.permute.xlu0 1
        %903 = vperm.xlu0 %902, %v304
        %v904 = vpop.permute.xlu0 %903
        %906 = vset.pattern.permute.xlu0 1
        %907 = vperm.xlu0 %906, %v305
        %v908 = vpop.permute.xlu0 %907
        %910 = vset.pattern.permute.xlu0 1
        %911 = vperm.xlu0 %910, %v306
        %v912 = vpop.permute.xlu0 %911
        %914 = vset.pattern.permute.xlu0 1
        %915 = vperm.xlu0 %914, %v307
        %v916 = vpop.permute.xlu0 %915
        %918 = vset.pattern.permute.xlu0 1
        %919 = vperm.xlu0 %918, %v308
        %v920 = vpop.permute.xlu0 %919
        %922 = vset.pattern.permute.xlu0 1
        %923 = vperm.xlu0 %922, %v309
        %v924 = vpop.permute.xlu0 %923
        %926 = vset.pattern.permute.xlu0 1
        %927 = vperm.xlu0 %926, %v310
        %v928 = vpop.permute.xlu0 %927
        %930 = vset.pattern.permute.xlu0 1
        %931 = vperm.xlu0 %930, %v311
        %v932 = vpop.permute.xlu0 %931
        %934 = vset.pattern.permute.xlu0 1
        %935 = vperm.xlu0 %934, %v312
        %v936 = vpop.permute.xlu0 %935
        %938 = vset.pattern.permute.xlu0 1
        %939 = vperm.xlu0 %938, %v313
        %v940 = vpop.permute.xlu0 %939
        %942 = vset.pattern.permute.xlu0 1
        %943 = vperm.xlu0 %942, %v314
        %v944 = vpop.permute.xlu0 %943
        %946 = vset.pattern.permute.xlu0 1
        %947 = vperm.xlu0 %946, %v315
        %v948 = vpop.permute.xlu0 %947
        %950 = vset.pattern.permute.xlu0 1
        %951 = vperm.xlu0 %950, %v316
        %v952 = vpop.permute.xlu0 %951
        %954 = vset.pattern.permute.xlu0 1
        %955 = vperm.xlu0 %954, %v317
        %v956 = vpop.permute.xlu0 %955
        %958 = vset.pattern.permute.xlu0 1
        %959 = vperm.xlu0 %958, %v318
        %v960 = vpop.permute.xlu0 %959
        %962 = vset.pattern.permute.xlu0 1
        %963 = vperm.xlu0 %962, %v319
        %v964 = vpop.permute.xlu0 %963
        %966 = vset.pattern.permute.xlu0 1
        %967 = vperm.xlu0 %966, %v320
        %v968 = vpop.permute.xlu0 %967
        %970 = vset.pattern.permute.xlu0 1
        %971 = vperm.xlu0 %970, %v321
        %v972 = vpop.permute.xlu0 %971
        %974 = vset.pattern.permute.xlu0 1
        %975 = vperm.xlu0 %974, %v322
        %v976 = vpop.permute.xlu0 %975
        %978 = vset.pattern.permute.xlu0 1
        %979 = vperm.xlu0 %978, %v323
        %v980 = vpop.permute.xlu0 %979
        %982 = vset.pattern.permute.xlu0 1
        %983 = vperm.xlu0 %982, %v324
        %v984 = vpop.permute.xlu0 %983
        %986 = vset.pattern.permute.xlu0 1
        %987 = vperm.xlu0 %986, %v325
        %v988 = vpop.permute.xlu0 %987
        %990 = vset.pattern.permute.xlu0 1
        %991 = vperm.xlu0 %990, %v326
        %v992 = vpop.permute.xlu0 %991
        %994 = vset.pattern.permute.xlu0 1
        %995 = vperm.xlu0 %994, %v327
        %v996 = vpop.permute.xlu0 %995
        %998 = vset.pattern.permute.xlu0 1
        %999 = vperm.xlu0 %998, %v328
        %v1000 = vpop.permute.xlu0 %999
        %1002 = vset.pattern.permute.xlu0 1
        %1003 = vperm.xlu0 %1002, %v329
        %v1004 = vpop.permute.xlu0 %1003
        %1006 = vset.pattern.permute.xlu0 1
        %1007 = vperm.xlu0 %1006, %v330
        %v1008 = vpop.permute.xlu0 %1007
        %1010 = vset.pattern.permute.xlu0 1
        %1011 = vperm.xlu0 %1010, %v331
        %v1012 = vpop.permute.xlu0 %1011
        %1014 = vset.pattern.permute.xlu0 1
        %1015 = vperm.xlu0 %1014, %v332
        %v1016 = vpop.permute.xlu0 %1015
        %1018 = vset.pattern.permute.xlu0 1
        %1019 = vperm.xlu0 %1018, %v333
        %v1020 = vpop.permute.xlu0 %1019
        %1022 = vset.pattern.permute.xlu0 1
        %1023 = vperm.xlu0 %1022, %v334
        %v1024 = vpop.permute.xlu0 %1023
        %1026 = vset.pattern.permute.xlu0 1
        %1027 = vperm.xlu0 %1026, %v335
        %v1028 = vpop.permute.xlu0 %1027
        %1030 = vset.pattern.permute.xlu0 1
        %1031 = vperm.xlu0 %1030, %v336
        %v1032 = vpop.permute.xlu0 %1031
        %1034 = vset.pattern.permute.xlu0 1
        %1035 = vperm.xlu0 %1034, %v337
        %v1036 = vpop.permute.xlu0 %1035
        %1038 = vset.pattern.permute.xlu0 1
        %1039 = vperm.xlu0 %1038, %v338
        %v1040 = vpop.permute.xlu0 %1039
        %1042 = vset.pattern.permute.xlu0 1
        %1043 = vperm.xlu0 %1042, %v339
        %v1044 = vpop.permute.xlu0 %1043
        %1046 = vset.pattern.permute.xlu0 1
        %1047 = vperm.xlu0 %1046, %v340
        %v1048 = vpop.permute.xlu0 %1047
        %1050 = vset.pattern.permute.xlu0 1
        %1051 = vperm.xlu0 %1050, %v341
        %v1052 = vpop.permute.xlu0 %1051
        %1054 = vset.pattern.permute.xlu0 1
        %1055 = vperm.xlu0 %1054, %v342
        %v1056 = vpop.permute.xlu0 %1055
        %1058 = vset.pattern.permute.xlu0 1
        %1059 = vperm.xlu0 %1058, %v343
        %v1060 = vpop.permute.xlu0 %1059
        %v1062 = vlaneseq
        %v1063 = vshrl.u32 %v1062, 7
        %v1064 = vsub.s32 1, %v1063
        %v1065 = vrot.slane %v344, %v1064
        %v1066 = vmul.f32 %v808, %v1065
        %v1067 = vmul.f32 %v812, %v1065
        %v1068 = vmul.f32 %v816, %v1065
        %v1069 = vmul.f32 %v820, %v1065
        %v1070 = vmul.f32 %v824, %v1065
        %v1071 = vmul.f32 %v828, %v1065
        %v1072 = vmul.f32 %v832, %v1065
        %v1073 = vmul.f32 %v836, %v1065
        %v1074 = vmul.f32 %v840, %v1065
        %v1075 = vmul.f32 %v844, %v1065
        %v1076 = vmul.f32 %v848, %v1065
        %v1077 = vmul.f32 %v852, %v1065
        %v1078 = vmul.f32 %v856, %v1065
        %v1079 = vmul.f32 %v860, %v1065
        %v1080 = vmul.f32 %v864, %v1065
        %v1081 = vmul.f32 %v868, %v1065
        %v1082 = vmul.f32 %v872, %v1065
        %v1083 = vmul.f32 %v876, %v1065
        %v1084 = vmul.f32 %v880, %v1065
        %v1085 = vmul.f32 %v884, %v1065
        %v1086 = vmul.f32 %v888, %v1065
        %v1087 = vmul.f32 %v892, %v1065
        %v1088 = vmul.f32 %v896, %v1065
        %v1089 = vmul.f32 %v900, %v1065
        %v1090 = vmul.f32 %v904, %v1065
        %v1091 = vmul.f32 %v908, %v1065
        %v1092 = vmul.f32 %v912, %v1065
        %v1093 = vmul.f32 %v916, %v1065
        %v1094 = vmul.f32 %v920, %v1065
        %v1095 = vmul.f32 %v924, %v1065
        %v1096 = vmul.f32 %v928, %v1065
        %v1097 = vmul.f32 %v932, %v1065
        %v1098 = vmul.f32 %v936, %v1065
        %v1099 = vmul.f32 %v940, %v1065
        %v1100 = vmul.f32 %v944, %v1065
        %v1101 = vmul.f32 %v948, %v1065
        %v1102 = vmul.f32 %v952, %v1065
        %v1103 = vmul.f32 %v956, %v1065
        %v1104 = vmul.f32 %v960, %v1065
        %v1105 = vmul.f32 %v964, %v1065
        %v1106 = vmul.f32 %v968, %v1065
        %v1107 = vmul.f32 %v972, %v1065
        %v1108 = vmul.f32 %v976, %v1065
        %v1109 = vmul.f32 %v980, %v1065
        %v1110 = vmul.f32 %v984, %v1065
        %v1111 = vmul.f32 %v988, %v1065
        %v1112 = vmul.f32 %v992, %v1065
        %v1113 = vmul.f32 %v996, %v1065
        %v1114 = vmul.f32 %v1000, %v1065
        %v1115 = vmul.f32 %v1004, %v1065
        %v1116 = vmul.f32 %v1008, %v1065
        %v1117 = vmul.f32 %v1012, %v1065
        %v1118 = vmul.f32 %v1016, %v1065
        %v1119 = vmul.f32 %v1020, %v1065
        %v1120 = vmul.f32 %v1024, %v1065
        %v1121 = vmul.f32 %v1028, %v1065
        %v1122 = vmul.f32 %v1032, %v1065
        %v1123 = vmul.f32 %v1036, %v1065
        %v1124 = vmul.f32 %v1040, %v1065
        %v1125 = vmul.f32 %v1044, %v1065
        %v1126 = vmul.f32 %v1048, %v1065
        %v1127 = vmul.f32 %v1052, %v1065
        %v1128 = vmul.f32 %v1056, %v1065
        %v1129 = vmul.f32 %v1060, %v1065
        %v1130 = vadd.f32 %v742, %v1066
        %v1131 = vadd.f32 %v743, %v1067
        %v1132 = vadd.f32 %v744, %v1068
        %v1133 = vadd.f32 %v745, %v1069
        %v1134 = vadd.f32 %v746, %v1070
        %v1135 = vadd.f32 %v747, %v1071
        %v1136 = vadd.f32 %v748, %v1072
        %v1137 = vadd.f32 %v749, %v1073
        %v1138 = vadd.f32 %v750, %v1074
        %v1139 = vadd.f32 %v751, %v1075
        %v1140 = vadd.f32 %v752, %v1076
        %v1141 = vadd.f32 %v753, %v1077
        %v1142 = vadd.f32 %v754, %v1078
        %v1143 = vadd.f32 %v755, %v1079
        %v1144 = vadd.f32 %v756, %v1080
        %v1145 = vadd.f32 %v757, %v1081
        %v1146 = vadd.f32 %v758, %v1082
        %v1147 = vadd.f32 %v759, %v1083
        %v1148 = vadd.f32 %v760, %v1084
        %v1149 = vadd.f32 %v761, %v1085
        %v1150 = vadd.f32 %v762, %v1086
        %v1151 = vadd.f32 %v763, %v1087
        %v1152 = vadd.f32 %v764, %v1088
        %v1153 = vadd.f32 %v765, %v1089
        %v1154 = vadd.f32 %v766, %v1090
        %v1155 = vadd.f32 %v767, %v1091
        %v1156 = vadd.f32 %v768, %v1092
        %v1157 = vadd.f32 %v769, %v1093
        %v1158 = vadd.f32 %v770, %v1094
        %v1159 = vadd.f32 %v771, %v1095
        %v1160 = vadd.f32 %v772, %v1096
        %v1161 = vadd.f32 %v773, %v1097
        %v1162 = vadd.f32 %v774, %v1098
        %v1163 = vadd.f32 %v775, %v1099
        %v1164 = vadd.f32 %v776, %v1100
        %v1165 = vadd.f32 %v777, %v1101
        %v1166 = vadd.f32 %v778, %v1102
        %v1167 = vadd.f32 %v779, %v1103
        %v1168 = vadd.f32 %v780, %v1104
        %v1169 = vadd.f32 %v781, %v1105
        %v1170 = vadd.f32 %v782, %v1106
        %v1171 = vadd.f32 %v783, %v1107
        %v1172 = vadd.f32 %v784, %v1108
        %v1173 = vadd.f32 %v785, %v1109
        %v1174 = vadd.f32 %v786, %v1110
        %v1175 = vadd.f32 %v787, %v1111
        %v1176 = vadd.f32 %v788, %v1112
        %v1177 = vadd.f32 %v789, %v1113
        %v1178 = vadd.f32 %v790, %v1114
        %v1179 = vadd.f32 %v791, %v1115
        %v1180 = vadd.f32 %v792, %v1116
        %v1181 = vadd.f32 %v793, %v1117
        %v1182 = vadd.f32 %v794, %v1118
        %v1183 = vadd.f32 %v795, %v1119
        %v1184 = vadd.f32 %v796, %v1120
        %v1185 = vadd.f32 %v797, %v1121
        %v1186 = vadd.f32 %v798, %v1122
        %v1187 = vadd.f32 %v799, %v1123
        %v1188 = vadd.f32 %v800, %v1124
        %v1189 = vadd.f32 %v801, %v1125
        %v1190 = vadd.f32 %v802, %v1126
        %v1191 = vadd.f32 %v803, %v1127
        %v1192 = vadd.f32 %v804, %v1128
        %v1193 = vadd.f32 %v805, %v1129
        %1194 = vset.pattern.permute.xlu0 2
        %1195 = vperm.xlu0 %1194, %v280
        %v1196 = vpop.permute.xlu0 %1195
        %1198 = vset.pattern.permute.xlu0 2
        %1199 = vperm.xlu0 %1198, %v281
        %v1200 = vpop.permute.xlu0 %1199
        %1202 = vset.pattern.permute.xlu0 2
        %1203 = vperm.xlu0 %1202, %v282
        %v1204 = vpop.permute.xlu0 %1203
        %1206 = vset.pattern.permute.xlu0 2
        %1207 = vperm.xlu0 %1206, %v283
        %v1208 = vpop.permute.xlu0 %1207
        %1210 = vset.pattern.permute.xlu0 2
        %1211 = vperm.xlu0 %1210, %v284
        %v1212 = vpop.permute.xlu0 %1211
        %1214 = vset.pattern.permute.xlu0 2
        %1215 = vperm.xlu0 %1214, %v285
        %v1216 = vpop.permute.xlu0 %1215
        %1218 = vset.pattern.permute.xlu0 2
        %1219 = vperm.xlu0 %1218, %v286
        %v1220 = vpop.permute.xlu0 %1219
        %1222 = vset.pattern.permute.xlu0 2
        %1223 = vperm.xlu0 %1222, %v287
        %v1224 = vpop.permute.xlu0 %1223
        %1226 = vset.pattern.permute.xlu0 2
        %1227 = vperm.xlu0 %1226, %v288
        %v1228 = vpop.permute.xlu0 %1227
        %1230 = vset.pattern.permute.xlu0 2
        %1231 = vperm.xlu0 %1230, %v289
        %v1232 = vpop.permute.xlu0 %1231
        %1234 = vset.pattern.permute.xlu0 2
        %1235 = vperm.xlu0 %1234, %v290
        %v1236 = vpop.permute.xlu0 %1235
        %1238 = vset.pattern.permute.xlu0 2
        %1239 = vperm.xlu0 %1238, %v291
        %v1240 = vpop.permute.xlu0 %1239
        %1242 = vset.pattern.permute.xlu0 2
        %1243 = vperm.xlu0 %1242, %v292
        %v1244 = vpop.permute.xlu0 %1243
        %1246 = vset.pattern.permute.xlu0 2
        %1247 = vperm.xlu0 %1246, %v293
        %v1248 = vpop.permute.xlu0 %1247
        %1250 = vset.pattern.permute.xlu0 2
        %1251 = vperm.xlu0 %1250, %v294
        %v1252 = vpop.permute.xlu0 %1251
        %1254 = vset.pattern.permute.xlu0 2
        %1255 = vperm.xlu0 %1254, %v295
        %v1256 = vpop.permute.xlu0 %1255
        %1258 = vset.pattern.permute.xlu0 2
        %1259 = vperm.xlu0 %1258, %v296
        %v1260 = vpop.permute.xlu0 %1259
        %1262 = vset.pattern.permute.xlu0 2
        %1263 = vperm.xlu0 %1262, %v297
        %v1264 = vpop.permute.xlu0 %1263
        %1266 = vset.pattern.permute.xlu0 2
        %1267 = vperm.xlu0 %1266, %v298
        %v1268 = vpop.permute.xlu0 %1267
        %1270 = vset.pattern.permute.xlu0 2
        %1271 = vperm.xlu0 %1270, %v299
        %v1272 = vpop.permute.xlu0 %1271
        %1274 = vset.pattern.permute.xlu0 2
        %1275 = vperm.xlu0 %1274, %v300
        %v1276 = vpop.permute.xlu0 %1275
        %1278 = vset.pattern.permute.xlu0 2
        %1279 = vperm.xlu0 %1278, %v301
        %v1280 = vpop.permute.xlu0 %1279
        %1282 = vset.pattern.permute.xlu0 2
        %1283 = vperm.xlu0 %1282, %v302
        %v1284 = vpop.permute.xlu0 %1283
        %1286 = vset.pattern.permute.xlu0 2
        %1287 = vperm.xlu0 %1286, %v303
        %v1288 = vpop.permute.xlu0 %1287
        %1290 = vset.pattern.permute.xlu0 2
        %1291 = vperm.xlu0 %1290, %v304
        %v1292 = vpop.permute.xlu0 %1291
        %1294 = vset.pattern.permute.xlu0 2
        %1295 = vperm.xlu0 %1294, %v305
        %v1296 = vpop.permute.xlu0 %1295
        %1298 = vset.pattern.permute.xlu0 2
        %1299 = vperm.xlu0 %1298, %v306
        %v1300 = vpop.permute.xlu0 %1299
        %1302 = vset.pattern.permute.xlu0 2
        %1303 = vperm.xlu0 %1302, %v307
        %v1304 = vpop.permute.xlu0 %1303
        %1306 = vset.pattern.permute.xlu0 2
        %1307 = vperm.xlu0 %1306, %v308
        %v1308 = vpop.permute.xlu0 %1307
        %1310 = vset.pattern.permute.xlu0 2
        %1311 = vperm.xlu0 %1310, %v309
        %v1312 = vpop.permute.xlu0 %1311
        %1314 = vset.pattern.permute.xlu0 2
        %1315 = vperm.xlu0 %1314, %v310
        %v1316 = vpop.permute.xlu0 %1315
        %1318 = vset.pattern.permute.xlu0 2
        %1319 = vperm.xlu0 %1318, %v311
        %v1320 = vpop.permute.xlu0 %1319
        %1322 = vset.pattern.permute.xlu0 2
        %1323 = vperm.xlu0 %1322, %v312
        %v1324 = vpop.permute.xlu0 %1323
        %1326 = vset.pattern.permute.xlu0 2
        %1327 = vperm.xlu0 %1326, %v313
        %v1328 = vpop.permute.xlu0 %1327
        %1330 = vset.pattern.permute.xlu0 2
        %1331 = vperm.xlu0 %1330, %v314
        %v1332 = vpop.permute.xlu0 %1331
        %1334 = vset.pattern.permute.xlu0 2
        %1335 = vperm.xlu0 %1334, %v315
        %v1336 = vpop.permute.xlu0 %1335
        %1338 = vset.pattern.permute.xlu0 2
        %1339 = vperm.xlu0 %1338, %v316
        %v1340 = vpop.permute.xlu0 %1339
        %1342 = vset.pattern.permute.xlu0 2
        %1343 = vperm.xlu0 %1342, %v317
        %v1344 = vpop.permute.xlu0 %1343
        %1346 = vset.pattern.permute.xlu0 2
        %1347 = vperm.xlu0 %1346, %v318
        %v1348 = vpop.permute.xlu0 %1347
        %1350 = vset.pattern.permute.xlu0 2
        %1351 = vperm.xlu0 %1350, %v319
        %v1352 = vpop.permute.xlu0 %1351
        %1354 = vset.pattern.permute.xlu0 2
        %1355 = vperm.xlu0 %1354, %v320
        %v1356 = vpop.permute.xlu0 %1355
        %1358 = vset.pattern.permute.xlu0 2
        %1359 = vperm.xlu0 %1358, %v321
        %v1360 = vpop.permute.xlu0 %1359
        %1362 = vset.pattern.permute.xlu0 2
        %1363 = vperm.xlu0 %1362, %v322
        %v1364 = vpop.permute.xlu0 %1363
        %1366 = vset.pattern.permute.xlu0 2
        %1367 = vperm.xlu0 %1366, %v323
        %v1368 = vpop.permute.xlu0 %1367
        %1370 = vset.pattern.permute.xlu0 2
        %1371 = vperm.xlu0 %1370, %v324
        %v1372 = vpop.permute.xlu0 %1371
        %1374 = vset.pattern.permute.xlu0 2
        %1375 = vperm.xlu0 %1374, %v325
        %v1376 = vpop.permute.xlu0 %1375
        %1378 = vset.pattern.permute.xlu0 2
        %1379 = vperm.xlu0 %1378, %v326
        %v1380 = vpop.permute.xlu0 %1379
        %1382 = vset.pattern.permute.xlu0 2
        %1383 = vperm.xlu0 %1382, %v327
        %v1384 = vpop.permute.xlu0 %1383
        %1386 = vset.pattern.permute.xlu0 2
        %1387 = vperm.xlu0 %1386, %v328
        %v1388 = vpop.permute.xlu0 %1387
        %1390 = vset.pattern.permute.xlu0 2
        %1391 = vperm.xlu0 %1390, %v329
        %v1392 = vpop.permute.xlu0 %1391
        %1394 = vset.pattern.permute.xlu0 2
        %1395 = vperm.xlu0 %1394, %v330
        %v1396 = vpop.permute.xlu0 %1395
        %1398 = vset.pattern.permute.xlu0 2
        %1399 = vperm.xlu0 %1398, %v331
        %v1400 = vpop.permute.xlu0 %1399
        %1402 = vset.pattern.permute.xlu0 2
        %1403 = vperm.xlu0 %1402, %v332
        %v1404 = vpop.permute.xlu0 %1403
        %1406 = vset.pattern.permute.xlu0 2
        %1407 = vperm.xlu0 %1406, %v333
        %v1408 = vpop.permute.xlu0 %1407
        %1410 = vset.pattern.permute.xlu0 2
        %1411 = vperm.xlu0 %1410, %v334
        %v1412 = vpop.permute.xlu0 %1411
        %1414 = vset.pattern.permute.xlu0 2
        %1415 = vperm.xlu0 %1414, %v335
        %v1416 = vpop.permute.xlu0 %1415
        %1418 = vset.pattern.permute.xlu0 2
        %1419 = vperm.xlu0 %1418, %v336
        %v1420 = vpop.permute.xlu0 %1419
        %1422 = vset.pattern.permute.xlu0 2
        %1423 = vperm.xlu0 %1422, %v337
        %v1424 = vpop.permute.xlu0 %1423
        %1426 = vset.pattern.permute.xlu0 2
        %1427 = vperm.xlu0 %1426, %v338
        %v1428 = vpop.permute.xlu0 %1427
        %1430 = vset.pattern.permute.xlu0 2
        %1431 = vperm.xlu0 %1430, %v339
        %v1432 = vpop.permute.xlu0 %1431
        %1434 = vset.pattern.permute.xlu0 2
        %1435 = vperm.xlu0 %1434, %v340
        %v1436 = vpop.permute.xlu0 %1435
        %1438 = vset.pattern.permute.xlu0 2
        %1439 = vperm.xlu0 %1438, %v341
        %v1440 = vpop.permute.xlu0 %1439
        %1442 = vset.pattern.permute.xlu0 2
        %1443 = vperm.xlu0 %1442, %v342
        %v1444 = vpop.permute.xlu0 %1443
        %1446 = vset.pattern.permute.xlu0 2
        %1447 = vperm.xlu0 %1446, %v343
        %v1448 = vpop.permute.xlu0 %1447
        %v1450 = vlaneseq
        %v1451 = vshrl.u32 %v1450, 7
        %v1452 = vsub.s32 2, %v1451
        %v1453 = vrot.slane %v344, %v1452
        %v1454 = vmul.f32 %v1196, %v1453
        %v1455 = vmul.f32 %v1200, %v1453
        %v1456 = vmul.f32 %v1204, %v1453
        %v1457 = vmul.f32 %v1208, %v1453
        %v1458 = vmul.f32 %v1212, %v1453
        %v1459 = vmul.f32 %v1216, %v1453
        %v1460 = vmul.f32 %v1220, %v1453
        %v1461 = vmul.f32 %v1224, %v1453
        %v1462 = vmul.f32 %v1228, %v1453
        %v1463 = vmul.f32 %v1232, %v1453
        %v1464 = vmul.f32 %v1236, %v1453
        %v1465 = vmul.f32 %v1240, %v1453
        %v1466 = vmul.f32 %v1244, %v1453
        %v1467 = vmul.f32 %v1248, %v1453
        %v1468 = vmul.f32 %v1252, %v1453
        %v1469 = vmul.f32 %v1256, %v1453
        %v1470 = vmul.f32 %v1260, %v1453
        %v1471 = vmul.f32 %v1264, %v1453
        %v1472 = vmul.f32 %v1268, %v1453
        %v1473 = vmul.f32 %v1272, %v1453
        %v1474 = vmul.f32 %v1276, %v1453
        %v1475 = vmul.f32 %v1280, %v1453
        %v1476 = vmul.f32 %v1284, %v1453
        %v1477 = vmul.f32 %v1288, %v1453
        %v1478 = vmul.f32 %v1292, %v1453
        %v1479 = vmul.f32 %v1296, %v1453
        %v1480 = vmul.f32 %v1300, %v1453
        %v1481 = vmul.f32 %v1304, %v1453
        %v1482 = vmul.f32 %v1308, %v1453
        %v1483 = vmul.f32 %v1312, %v1453
        %v1484 = vmul.f32 %v1316, %v1453
        %v1485 = vmul.f32 %v1320, %v1453
        %v1486 = vmul.f32 %v1324, %v1453
        %v1487 = vmul.f32 %v1328, %v1453
        %v1488 = vmul.f32 %v1332, %v1453
        %v1489 = vmul.f32 %v1336, %v1453
        %v1490 = vmul.f32 %v1340, %v1453
        %v1491 = vmul.f32 %v1344, %v1453
        %v1492 = vmul.f32 %v1348, %v1453
        %v1493 = vmul.f32 %v1352, %v1453
        %v1494 = vmul.f32 %v1356, %v1453
        %v1495 = vmul.f32 %v1360, %v1453
        %v1496 = vmul.f32 %v1364, %v1453
        %v1497 = vmul.f32 %v1368, %v1453
        %v1498 = vmul.f32 %v1372, %v1453
        %v1499 = vmul.f32 %v1376, %v1453
        %v1500 = vmul.f32 %v1380, %v1453
        %v1501 = vmul.f32 %v1384, %v1453
        %v1502 = vmul.f32 %v1388, %v1453
        %v1503 = vmul.f32 %v1392, %v1453
        %v1504 = vmul.f32 %v1396, %v1453
        %v1505 = vmul.f32 %v1400, %v1453
        %v1506 = vmul.f32 %v1404, %v1453
        %v1507 = vmul.f32 %v1408, %v1453
        %v1508 = vmul.f32 %v1412, %v1453
        %v1509 = vmul.f32 %v1416, %v1453
        %v1510 = vmul.f32 %v1420, %v1453
        %v1511 = vmul.f32 %v1424, %v1453
        %v1512 = vmul.f32 %v1428, %v1453
        %v1513 = vmul.f32 %v1432, %v1453
        %v1514 = vmul.f32 %v1436, %v1453
        %v1515 = vmul.f32 %v1440, %v1453
        %v1516 = vmul.f32 %v1444, %v1453
        %v1517 = vmul.f32 %v1448, %v1453
        %v1518 = vadd.f32 %v1130, %v1454
        %v1519 = vadd.f32 %v1131, %v1455
        %v1520 = vadd.f32 %v1132, %v1456
        %v1521 = vadd.f32 %v1133, %v1457
        %v1522 = vadd.f32 %v1134, %v1458
        %v1523 = vadd.f32 %v1135, %v1459
        %v1524 = vadd.f32 %v1136, %v1460
        %v1525 = vadd.f32 %v1137, %v1461
        %v1526 = vadd.f32 %v1138, %v1462
        %v1527 = vadd.f32 %v1139, %v1463
        %v1528 = vadd.f32 %v1140, %v1464
        %v1529 = vadd.f32 %v1141, %v1465
        %v1530 = vadd.f32 %v1142, %v1466
        %v1531 = vadd.f32 %v1143, %v1467
        %v1532 = vadd.f32 %v1144, %v1468
        %v1533 = vadd.f32 %v1145, %v1469
        %v1534 = vadd.f32 %v1146, %v1470
        %v1535 = vadd.f32 %v1147, %v1471
        %v1536 = vadd.f32 %v1148, %v1472
        %v1537 = vadd.f32 %v1149, %v1473
        %v1538 = vadd.f32 %v1150, %v1474
        %v1539 = vadd.f32 %v1151, %v1475
        %v1540 = vadd.f32 %v1152, %v1476
        %v1541 = vadd.f32 %v1153, %v1477
        %v1542 = vadd.f32 %v1154, %v1478
        %v1543 = vadd.f32 %v1155, %v1479
        %v1544 = vadd.f32 %v1156, %v1480
        %v1545 = vadd.f32 %v1157, %v1481
        %v1546 = vadd.f32 %v1158, %v1482
        %v1547 = vadd.f32 %v1159, %v1483
        %v1548 = vadd.f32 %v1160, %v1484
        %v1549 = vadd.f32 %v1161, %v1485
        %v1550 = vadd.f32 %v1162, %v1486
        %v1551 = vadd.f32 %v1163, %v1487
        %v1552 = vadd.f32 %v1164, %v1488
        %v1553 = vadd.f32 %v1165, %v1489
        %v1554 = vadd.f32 %v1166, %v1490
        %v1555 = vadd.f32 %v1167, %v1491
        %v1556 = vadd.f32 %v1168, %v1492
        %v1557 = vadd.f32 %v1169, %v1493
        %v1558 = vadd.f32 %v1170, %v1494
        %v1559 = vadd.f32 %v1171, %v1495
        %v1560 = vadd.f32 %v1172, %v1496
        %v1561 = vadd.f32 %v1173, %v1497
        %v1562 = vadd.f32 %v1174, %v1498
        %v1563 = vadd.f32 %v1175, %v1499
        %v1564 = vadd.f32 %v1176, %v1500
        %v1565 = vadd.f32 %v1177, %v1501
        %v1566 = vadd.f32 %v1178, %v1502
        %v1567 = vadd.f32 %v1179, %v1503
        %v1568 = vadd.f32 %v1180, %v1504
        %v1569 = vadd.f32 %v1181, %v1505
        %v1570 = vadd.f32 %v1182, %v1506
        %v1571 = vadd.f32 %v1183, %v1507
        %v1572 = vadd.f32 %v1184, %v1508
        %v1573 = vadd.f32 %v1185, %v1509
        %v1574 = vadd.f32 %v1186, %v1510
        %v1575 = vadd.f32 %v1187, %v1511
        %v1576 = vadd.f32 %v1188, %v1512
        %v1577 = vadd.f32 %v1189, %v1513
        %v1578 = vadd.f32 %v1190, %v1514
        %v1579 = vadd.f32 %v1191, %v1515
        %v1580 = vadd.f32 %v1192, %v1516
        %v1581 = vadd.f32 %v1193, %v1517
        %v1582 = vmax.f32 %v1518, 0.0
        %v1583 = vmax.f32 %v1519, 0.0
        %v1584 = vmax.f32 %v1520, 0.0
        %v1585 = vmax.f32 %v1521, 0.0
        %v1586 = vmax.f32 %v1522, 0.0
        %v1587 = vmax.f32 %v1523, 0.0
        %v1588 = vmax.f32 %v1524, 0.0
        %v1589 = vmax.f32 %v1525, 0.0
        %v1590 = vmax.f32 %v1526, 0.0
        %v1591 = vmax.f32 %v1527, 0.0
        %v1592 = vmax.f32 %v1528, 0.0
        %v1593 = vmax.f32 %v1529, 0.0
        %v1594 = vmax.f32 %v1530, 0.0
        %v1595 = vmax.f32 %v1531, 0.0
        %v1596 = vmax.f32 %v1532, 0.0
        %v1597 = vmax.f32 %v1533, 0.0
        %v1598 = vmax.f32 %v1534, 0.0
        %v1599 = vmax.f32 %v1535, 0.0
        %v1600 = vmax.f32 %v1536, 0.0
        %v1601 = vmax.f32 %v1537, 0.0
        %v1602 = vmax.f32 %v1538, 0.0
        %v1603 = vmax.f32 %v1539, 0.0
        %v1604 = vmax.f32 %v1540, 0.0
        %v1605 = vmax.f32 %v1541, 0.0
        %v1606 = vmax.f32 %v1542, 0.0
        %v1607 = vmax.f32 %v1543, 0.0
        %v1608 = vmax.f32 %v1544, 0.0
        %v1609 = vmax.f32 %v1545, 0.0
        %v1610 = vmax.f32 %v1546, 0.0
        %v1611 = vmax.f32 %v1547, 0.0
        %v1612 = vmax.f32 %v1548, 0.0
        %v1613 = vmax.f32 %v1549, 0.0
        %v1614 = vmax.f32 %v1550, 0.0
        %v1615 = vmax.f32 %v1551, 0.0
        %v1616 = vmax.f32 %v1552, 0.0
        %v1617 = vmax.f32 %v1553, 0.0
        %v1618 = vmax.f32 %v1554, 0.0
        %v1619 = vmax.f32 %v1555, 0.0
        %v1620 = vmax.f32 %v1556, 0.0
        %v1621 = vmax.f32 %v1557, 0.0
        %v1622 = vmax.f32 %v1558, 0.0
        %v1623 = vmax.f32 %v1559, 0.0
        %v1624 = vmax.f32 %v1560, 0.0
        %v1625 = vmax.f32 %v1561, 0.0
        %v1626 = vmax.f32 %v1562, 0.0
        %v1627 = vmax.f32 %v1563, 0.0
        %v1628 = vmax.f32 %v1564, 0.0
        %v1629 = vmax.f32 %v1565, 0.0
        %v1630 = vmax.f32 %v1566, 0.0
        %v1631 = vmax.f32 %v1567, 0.0
        %v1632 = vmax.f32 %v1568, 0.0
        %v1633 = vmax.f32 %v1569, 0.0
        %v1634 = vmax.f32 %v1570, 0.0
        %v1635 = vmax.f32 %v1571, 0.0
        %v1636 = vmax.f32 %v1572, 0.0
        %v1637 = vmax.f32 %v1573, 0.0
        %v1638 = vmax.f32 %v1574, 0.0
        %v1639 = vmax.f32 %v1575, 0.0
        %v1640 = vmax.f32 %v1576, 0.0
        %v1641 = vmax.f32 %v1577, 0.0
        %v1642 = vmax.f32 %v1578, 0.0
        %v1643 = vmax.f32 %v1579, 0.0
        %v1644 = vmax.f32 %v1580, 0.0
        %v1645 = vmax.f32 %v1581, 0.0
        %v1646 = vld [vmem:[%s3] sm:$0xff]
        %v1647 = vld [vmem:[%s3 + $0x8] sm:$0xff]
        %v1648 = vld [vmem:[%s3 + $0x10] sm:$0xff]
        %v1649 = vld [vmem:[%s3 + $0x18] sm:$0xff]
        %v1650 = vld [vmem:[%s3 + $0x20] sm:$0xff]
        %v1651 = vld [vmem:[%s3 + $0x28] sm:$0xff]
        %v1652 = vld [vmem:[%s3 + $0x30] sm:$0xff]
        %v1653 = vld [vmem:[%s3 + $0x38] sm:$0xff]
        %v1655 = vlaneseq
        %v1656 = vshrl.u32 %v1655, 7
        %v1657 = vsub.s32 0, %v1656
        %v1658 = vrot.slane %v346, %v1657
        %vm1660 = vcmask 523264
        %v1662 = vsel %vm1660, %v1582, 0
        %v1665 = vsel %vm1660, %v1583, 0
        %v1668 = vsel %vm1660, %v1584, 0
        %v1671 = vsel %vm1660, %v1585, 0
        %v1674 = vsel %vm1660, %v1586, 0
        %v1677 = vsel %vm1660, %v1587, 0
        %v1680 = vsel %vm1660, %v1588, 0
        %v1683 = vsel %vm1660, %v1589, 0
        %v1686 = vsel %vm1660, %v1590, 0
        %v1689 = vsel %vm1660, %v1591, 0
        %v1692 = vsel %vm1660, %v1592, 0
        %v1695 = vsel %vm1660, %v1593, 0
        %v1698 = vsel %vm1660, %v1594, 0
        %v1701 = vsel %vm1660, %v1595, 0
        %v1704 = vsel %vm1660, %v1596, 0
        %v1707 = vsel %vm1660, %v1597, 0
        %v1710 = vsel %vm1660, %v1598, 0
        %v1713 = vsel %vm1660, %v1599, 0
        %v1716 = vsel %vm1660, %v1600, 0
        %v1719 = vsel %vm1660, %v1601, 0
        %v1722 = vsel %vm1660, %v1602, 0
        %v1725 = vsel %vm1660, %v1603, 0
        %v1728 = vsel %vm1660, %v1604, 0
        %v1731 = vsel %vm1660, %v1605, 0
        %v1734 = vsel %vm1660, %v1606, 0
        %v1737 = vsel %vm1660, %v1607, 0
        %v1740 = vsel %vm1660, %v1608, 0
        %v1743 = vsel %vm1660, %v1609, 0
        %v1746 = vsel %vm1660, %v1610, 0
        %v1749 = vsel %vm1660, %v1611, 0
        %v1752 = vsel %vm1660, %v1612, 0
        %v1755 = vsel %vm1660, %v1613, 0
        %v1758 = vsel %vm1660, %v1614, 0
        %v1761 = vsel %vm1660, %v1615, 0
        %v1764 = vsel %vm1660, %v1616, 0
        %v1767 = vsel %vm1660, %v1617, 0
        %v1770 = vsel %vm1660, %v1618, 0
        %v1773 = vsel %vm1660, %v1619, 0
        %v1776 = vsel %vm1660, %v1620, 0
        %v1779 = vsel %vm1660, %v1621, 0
        %v1782 = vsel %vm1660, %v1622, 0
        %v1785 = vsel %vm1660, %v1623, 0
        %v1788 = vsel %vm1660, %v1624, 0
        %v1791 = vsel %vm1660, %v1625, 0
        %v1794 = vsel %vm1660, %v1626, 0
        %v1797 = vsel %vm1660, %v1627, 0
        %v1800 = vsel %vm1660, %v1628, 0
        %v1803 = vsel %vm1660, %v1629, 0
        %v1806 = vsel %vm1660, %v1630, 0
        %v1809 = vsel %vm1660, %v1631, 0
        %v1812 = vsel %vm1660, %v1632, 0
        %v1815 = vsel %vm1660, %v1633, 0
        %v1818 = vsel %vm1660, %v1634, 0
        %v1821 = vsel %vm1660, %v1635, 0
        %v1824 = vsel %vm1660, %v1636, 0
        %v1827 = vsel %vm1660, %v1637, 0
        %v1830 = vsel %vm1660, %v1638, 0
        %v1833 = vsel %vm1660, %v1639, 0
        %v1836 = vsel %vm1660, %v1640, 0
        %v1839 = vsel %vm1660, %v1641, 0
        %v1842 = vsel %vm1660, %v1642, 0
        %v1845 = vsel %vm1660, %v1643, 0
        %v1848 = vsel %vm1660, %v1644, 0
        %v1851 = vsel %vm1660, %v1645, 0
        %1853 = vmatprep.subr.mxu0 0.0
        %1854 = vmatpush1.msra.mxu0 %v1646
        %1855 = vmatprep.subr.mxu0 0.0
        %1856 = vmatpush1.msra.mxu0 %v1647
        %1857 = vmatprep.subr.mxu0 0.0
        %1858 = vmatpush1.msra.mxu0 %v1648
        %1859 = vmatprep.subr.mxu0 0.0
        %1860 = vmatpush1.msra.mxu0 %v1649
        %1861 = vmatprep.subr.mxu0 0.0
        %1862 = vmatpush1.msra.mxu0 %v1650
        %1863 = vmatprep.subr.mxu0 0.0
        %1864 = vmatpush1.msra.mxu0 %v1651
        %1865 = vmatprep.subr.mxu0 0.0
        %1866 = vmatpush1.msra.mxu0 %v1652
        %1867 = vmatprep.subr.mxu0 0.0
        %1868 = vmatpush1.msra.mxu0 %v1653
        %1869 = vmatprep.subr.mxu0 0.0
        %1870 = vmatpush1.msra.mxu0 0.0
        %1871 = vmatprep.subr.mxu0 0.0
        %1872 = vmatpush1.msra.mxu0 0.0
        %1873 = vmatprep.subr.mxu0 0.0
        %1874 = vmatpush1.msra.mxu0 0.0
        %1875 = vmatprep.subr.mxu0 0.0
        %1876 = vmatpush1.msra.mxu0 0.0
        %1877 = vmatprep.subr.mxu0 0.0
        %1878 = vmatpush1.msra.mxu0 0.0
        %1879 = vmatprep.subr.mxu0 0.0
        %1880 = vmatpush1.msra.mxu0 0.0
        %1881 = vmatprep.subr.mxu0 0.0
        %1882 = vmatpush1.msra.mxu0 0.0
        %1883 = vmatprep.subr.mxu0 0.0
        %1884 = vmatpush1.msra.mxu0 0.0
        %1885 = vmatprep.subr.mxu0 0.0
        %1886 = vmatpush1.msra.mxu0 0.0
        %1887 = vmatprep.subr.mxu0 0.0
        %1888 = vmatpush1.msra.mxu0 0.0
        %1889 = vmatprep.subr.mxu0 0.0
        %1890 = vmatpush1.msra.mxu0 0.0
        %1891 = vmatprep.subr.mxu0 0.0
        %1892 = vmatpush1.msra.mxu0 0.0
        %1893 = vmatprep.subr.mxu0 0.0
        %1894 = vmatpush1.msra.mxu0 0.0
        %1895 = vmatprep.subr.mxu0 0.0
        %1896 = vmatpush1.msra.mxu0 0.0
        %1897 = vmatprep.subr.mxu0 0.0
        %1898 = vmatpush1.msra.mxu0 0.0
        %1899 = vmatprep.subr.mxu0 0.0
        %1900 = vmatpush1.msra.mxu0 0.0
        %1901 = vmatprep.subr.mxu0 0.0
        %1902 = vmatpush1.msra.mxu0 0.0
        %1903 = vmatprep.subr.mxu0 0.0
        %1904 = vmatpush1.msra.mxu0 0.0
        %1905 = vmatprep.subr.mxu0 0.0
        %1906 = vmatpush1.msra.mxu0 0.0
        %1907 = vmatprep.subr.mxu0 0.0
        %1908 = vmatpush1.msra.mxu0 0.0
        %1909 = vmatprep.subr.mxu0 0.0
        %1910 = vmatpush1.msra.mxu0 0.0
        %1911 = vmatprep.subr.mxu0 0.0
        %1912 = vmatpush1.msra.mxu0 0.0
        %1913 = vmatprep.subr.mxu0 0.0
        %1914 = vmatpush1.msra.mxu0 0.0
        %1915 = vmatprep.subr.mxu0 0.0
        %1916 = vmatpush1.msra.mxu0 0.0
        %1917 = vmatprep.mubr.f32.mxu0 0.0
        %1918 = vmatmul.mubr.f32.gmra.mrb[0].mxu0 %v1662
        %v1919 = vpop.f32.mrb[0].mxu0
        %v1920 = vadd.f32 %v1658, %v1919
        %v1921 = vpop.f32.mrb[0].mxu0
        %1922 = vmatprep.mubr.f32.mxu0 0.0
        %1923 = vmatmul.mubr.f32.gmra.mrb[0].mxu0 %v1665
        %v1924 = vpop.f32.mrb[0].mxu0
        %v1925 = vadd.f32 %v1658, %v1924
        %v1926 = vpop.f32.mrb[0].mxu0
        %1927 = vmatprep.mubr.f32.mxu0 0.0
        %1928 = vmatmul.mubr.f32.gmra.mrb[0].mxu0 %v1668
        %v1929 = vpop.f32.mrb[0].mxu0
        %v1930 = vadd.f32 %v1658, %v1929
        %v1931 = vpop.f32.mrb[0].mxu0
        %1932 = vmatprep.mubr.f32.mxu0 0.0
        %1933 = vmatmul.mubr.f32.gmra.mrb[0].mxu0 %v1671
        %v1934 = vpop.f32.mrb[0].mxu0
        %v1935 = vadd.f32 %v1658, %v1934
        %v1936 = vpop.f32.mrb[0].mxu0
        %1937 = vmatprep.mubr.f32.mxu0 0.0
        %1938 = vmatmul.mubr.f32.gmra.mrb[0].mxu0 %v1674
        %v1939 = vpop.f32.mrb[0].mxu0
        %v1940 = vadd.f32 %v1658, %v1939
        %v1941 = vpop.f32.mrb[0].mxu0
        %1942 = vmatprep.mubr.f32.mxu0 0.0
        %1943 = vmatmul.mubr.f32.gmra.mrb[0].mxu0 %v1677
        %v1944 = vpop.f32.mrb[0].mxu0
        %v1945 = vadd.f32 %v1658, %v1944
        %v1946 = vpop.f32.mrb[0].mxu0
        %1947 = vmatprep.mubr.f32.mxu0 0.0
        %1948 = vmatmul.mubr.f32.gmra.mrb[0].mxu0 %v1680
        %v1949 = vpop.f32.mrb[0].mxu0
        %v1950 = vadd.f32 %v1658, %v1949
        %v1951 = vpop.f32.mrb[0].mxu0
        %1952 = vmatprep.mubr.f32.mxu0 0.0
        %1953 = vmatmul.mubr.f32.gmra.mrb[0].mxu0 %v1683
        %v1954 = vpop.f32.mrb[0].mxu0
        %v1955 = vadd.f32 %v1658, %v1954
        %v1956 = vpop.f32.mrb[0].mxu0
        %1957 = vmatprep.mubr.f32.mxu0 0.0
        %1958 = vmatmul.mubr.f32.gmra.mrb[0].mxu0 %v1686
        %v1959 = vpop.f32.mrb[0].mxu0
        %v1960 = vadd.f32 %v1658, %v1959
        %v1961 = vpop.f32.mrb[0].mxu0
        %1962 = vmatprep.mubr.f32.mxu0 0.0
        %1963 = vmatmul.mubr.f32.gmra.mrb[0].mxu0 %v1689
        %v1964 = vpop.f32.mrb[0].mxu0
        %v1965 = vadd.f32 %v1658, %v1964
        %v1966 = vpop.f32.mrb[0].mxu0
        %1967 = vmatprep.mubr.f32.mxu0 0.0
        %1968 = vmatmul.mubr.f32.gmra.mrb[0].mxu0 %v1692
        %v1969 = vpop.f32.mrb[0].mxu0
        %v1970 = vadd.f32 %v1658, %v1969
        %v1971 = vpop.f32.mrb[0].mxu0
        %1972 = vmatprep.mubr.f32.mxu0 0.0
        %1973 = vmatmul.mubr.f32.gmra.mrb[0].mxu0 %v1695
        %v1974 = vpop.f32.mrb[0].mxu0
        %v1975 = vadd.f32 %v1658, %v1974
        %v1976 = vpop.f32.mrb[0].mxu0
        %1977 = vmatprep.mubr.f32.mxu0 0.0
        %1978 = vmatmul.mubr.f32.gmra.mrb[0].mxu0 %v1698
        %v1979 = vpop.f32.mrb[0].mxu0
        %v1980 = vadd.f32 %v1658, %v1979
        %v1981 = vpop.f32.mrb[0].mxu0
        %1982 = vmatprep.mubr.f32.mxu0 0.0
        %1983 = vmatmul.mubr.f32.gmra.mrb[0].mxu0 %v1701
        %v1984 = vpop.f32.mrb[0].mxu0
        %v1985 = vadd.f32 %v1658, %v1984
        %v1986 = vpop.f32.mrb[0].mxu0
        %1987 = vmatprep.mubr.f32.mxu0 0.0
        %1988 = vmatmul.mubr.f32.gmra.mrb[0].mxu0 %v1704
        %v1989 = vpop.f32.mrb[0].mxu0
        %v1990 = vadd.f32 %v1658, %v1989
        %v1991 = vpop.f32.mrb[0].mxu0
        %1992 = vmatprep.mubr.f32.mxu0 0.0
        %1993 = vmatmul.mubr.f32.gmra.mrb[0].mxu0 %v1707
        %v1994 = vpop.f32.mrb[0].mxu0
        %v1995 = vadd.f32 %v1658, %v1994
        %v1996 = vpop.f32.mrb[0].mxu0
        %1997 = vmatprep.mubr.f32.mxu0 0.0
        %1998 = vmatmul.mubr.f32.gmra.mrb[0].mxu0 %v1710
        %v1999 = vpop.f32.mrb[0].mxu0
        %v2000 = vadd.f32 %v1658, %v1999
        %v2001 = vpop.f32.mrb[0].mxu0
        %2002 = vmatprep.mubr.f32.mxu0 0.0
        %2003 = vmatmul.mubr.f32.gmra.mrb[0].mxu0 %v1713
        %v2004 = vpop.f32.mrb[0].mxu0
        %v2005 = vadd.f32 %v1658, %v2004
        %v2006 = vpop.f32.mrb[0].mxu0
        %2007 = vmatprep.mubr.f32.mxu0 0.0
        %2008 = vmatmul.mubr.f32.gmra.mrb[0].mxu0 %v1716
        %v2009 = vpop.f32.mrb[0].mxu0
        %v2010 = vadd.f32 %v1658, %v2009
        %v2011 = vpop.f32.mrb[0].mxu0
        %2012 = vmatprep.mubr.f32.mxu0 0.0
        %2013 = vmatmul.mubr.f32.gmra.mrb[0].mxu0 %v1719
        %v2014 = vpop.f32.mrb[0].mxu0
        %v2015 = vadd.f32 %v1658, %v2014
        %v2016 = vpop.f32.mrb[0].mxu0
        %2017 = vmatprep.mubr.f32.mxu0 0.0
        %2018 = vmatmul.mubr.f32.gmra.mrb[0].mxu0 %v1722
        %v2019 = vpop.f32.mrb[0].mxu0
        %v2020 = vadd.f32 %v1658, %v2019
        %v2021 = vpop.f32.mrb[0].mxu0
        %2022 = vmatprep.mubr.f32.mxu0 0.0
        %2023 = vmatmul.mubr.f32.gmra.mrb[0].mxu0 %v1725
        %v2024 = vpop.f32.mrb[0].mxu0
        %v2025 = vadd.f32 %v1658, %v2024
        %v2026 = vpop.f32.mrb[0].mxu0
        %2027 = vmatprep.mubr.f32.mxu0 0.0
        %2028 = vmatmul.mubr.f32.gmra.mrb[0].mxu0 %v1728
        %v2029 = vpop.f32.mrb[0].mxu0
        %v2030 = vadd.f32 %v1658, %v2029
        %v2031 = vpop.f32.mrb[0].mxu0
        %2032 = vmatprep.mubr.f32.mxu0 0.0
        %2033 = vmatmul.mubr.f32.gmra.mrb[0].mxu0 %v1731
        %v2034 = vpop.f32.mrb[0].mxu0
        %v2035 = vadd.f32 %v1658, %v2034
        %v2036 = vpop.f32.mrb[0].mxu0
        %2037 = vmatprep.mubr.f32.mxu0 0.0
        %2038 = vmatmul.mubr.f32.gmra.mrb[0].mxu0 %v1734
        %v2039 = vpop.f32.mrb[0].mxu0
        %v2040 = vadd.f32 %v1658, %v2039
        %v2041 = vpop.f32.mrb[0].mxu0
        %2042 = vmatprep.mubr.f32.mxu0 0.0
        %2043 = vmatmul.mubr.f32.gmra.mrb[0].mxu0 %v1737
        %v2044 = vpop.f32.mrb[0].mxu0
        %v2045 = vadd.f32 %v1658, %v2044
        %v2046 = vpop.f32.mrb[0].mxu0
        %2047 = vmatprep.mubr.f32.mxu0 0.0
        %2048 = vmatmul.mubr.f32.gmra.mrb[0].mxu0 %v1740
        %v2049 = vpop.f32.mrb[0].mxu0
        %v2050 = vadd.f32 %v1658, %v2049
        %v2051 = vpop.f32.mrb[0].mxu0
        %2052 = vmatprep.mubr.f32.mxu0 0.0
        %2053 = vmatmul.mubr.f32.gmra.mrb[0].mxu0 %v1743
        %v2054 = vpop.f32.mrb[0].mxu0
        %v2055 = vadd.f32 %v1658, %v2054
        %v2056 = vpop.f32.mrb[0].mxu0
        %2057 = vmatprep.mubr.f32.mxu0 0.0
        %2058 = vmatmul.mubr.f32.gmra.mrb[0].mxu0 %v1746
        %v2059 = vpop.f32.mrb[0].mxu0
        %v2060 = vadd.f32 %v1658, %v2059
        %v2061 = vpop.f32.mrb[0].mxu0
        %2062 = vmatprep.mubr.f32.mxu0 0.0
        %2063 = vmatmul.mubr.f32.gmra.mrb[0].mxu0 %v1749
        %v2064 = vpop.f32.mrb[0].mxu0
        %v2065 = vadd.f32 %v1658, %v2064
        %v2066 = vpop.f32.mrb[0].mxu0
        %2067 = vmatprep.mubr.f32.mxu0 0.0
        %2068 = vmatmul.mubr.f32.gmra.mrb[0].mxu0 %v1752
        %v2069 = vpop.f32.mrb[0].mxu0
        %v2070 = vadd.f32 %v1658, %v2069
        %v2071 = vpop.f32.mrb[0].mxu0
        %2072 = vmatprep.mubr.f32.mxu0 0.0
        %2073 = vmatmul.mubr.f32.gmra.mrb[0].mxu0 %v1755
        %v2074 = vpop.f32.mrb[0].mxu0
        %v2075 = vadd.f32 %v1658, %v2074
        %v2076 = vpop.f32.mrb[0].mxu0
        %2077 = vmatprep.mubr.f32.mxu0 0.0
        %2078 = vmatmul.mubr.f32.gmra.mrb[0].mxu0 %v1758
        %v2079 = vpop.f32.mrb[0].mxu0
        %v2080 = vadd.f32 %v1658, %v2079
        %v2081 = vpop.f32.mrb[0].mxu0
        %2082 = vmatprep.mubr.f32.mxu0 0.0
        %2083 = vmatmul.mubr.f32.gmra.mrb[0].mxu0 %v1761
        %v2084 = vpop.f32.mrb[0].mxu0
        %v2085 = vadd.f32 %v1658, %v2084
        %v2086 = vpop.f32.mrb[0].mxu0
        %2087 = vmatprep.mubr.f32.mxu0 0.0
        %2088 = vmatmul.mubr.f32.gmra.mrb[0].mxu0 %v1764
        %v2089 = vpop.f32.mrb[0].mxu0
        %v2090 = vadd.f32 %v1658, %v2089
        %v2091 = vpop.f32.mrb[0].mxu0
        %2092 = vmatprep.mubr.f32.mxu0 0.0
        %2093 = vmatmul.mubr.f32.gmra.mrb[0].mxu0 %v1767
        %v2094 = vpop.f32.mrb[0].mxu0
        %v2095 = vadd.f32 %v1658, %v2094
        %v2096 = vpop.f32.mrb[0].mxu0
        %2097 = vmatprep.mubr.f32.mxu0 0.0
        %2098 = vmatmul.mubr.f32.gmra.mrb[0].mxu0 %v1770
        %v2099 = vpop.f32.mrb[0].mxu0
        %v2100 = vadd.f32 %v1658, %v2099
        %v2101 = vpop.f32.mrb[0].mxu0
        %2102 = vmatprep.mubr.f32.mxu0 0.0
        %2103 = vmatmul.mubr.f32.gmra.mrb[0].mxu0 %v1773
        %v2104 = vpop.f32.mrb[0].mxu0
        %v2105 = vadd.f32 %v1658, %v2104
        %v2106 = vpop.f32.mrb[0].mxu0
        %2107 = vmatprep.mubr.f32.mxu0 0.0
        %2108 = vmatmul.mubr.f32.gmra.mrb[0].mxu0 %v1776
        %v2109 = vpop.f32.mrb[0].mxu0
        %v2110 = vadd.f32 %v1658, %v2109
        %v2111 = vpop.f32.mrb[0].mxu0
        %2112 = vmatprep.mubr.f32.mxu0 0.0
        %2113 = vmatmul.mubr.f32.gmra.mrb[0].mxu0 %v1779
        %v2114 = vpop.f32.mrb[0].mxu0
        %v2115 = vadd.f32 %v1658, %v2114
        %v2116 = vpop.f32.mrb[0].mxu0
        %2117 = vmatprep.mubr.f32.mxu0 0.0
        %2118 = vmatmul.mubr.f32.gmra.mrb[0].mxu0 %v1782
        %v2119 = vpop.f32.mrb[0].mxu0
        %v2120 = vadd.f32 %v1658, %v2119
        %v2121 = vpop.f32.mrb[0].mxu0
        %2122 = vmatprep.mubr.f32.mxu0 0.0
        %2123 = vmatmul.mubr.f32.gmra.mrb[0].mxu0 %v1785
        %v2124 = vpop.f32.mrb[0].mxu0
        %v2125 = vadd.f32 %v1658, %v2124
        %v2126 = vpop.f32.mrb[0].mxu0
        %2127 = vmatprep.mubr.f32.mxu0 0.0
        %2128 = vmatmul.mubr.f32.gmra.mrb[0].mxu0 %v1788
        %v2129 = vpop.f32.mrb[0].mxu0
        %v2130 = vadd.f32 %v1658, %v2129
        %v2131 = vpop.f32.mrb[0].mxu0
        %2132 = vmatprep.mubr.f32.mxu0 0.0
        %2133 = vmatmul.mubr.f32.gmra.mrb[0].mxu0 %v1791
        %v2134 = vpop.f32.mrb[0].mxu0
        %v2135 = vadd.f32 %v1658, %v2134
        %v2136 = vpop.f32.mrb[0].mxu0
        %2137 = vmatprep.mubr.f32.mxu0 0.0
        %2138 = vmatmul.mubr.f32.gmra.mrb[0].mxu0 %v1794
        %v2139 = vpop.f32.mrb[0].mxu0
        %v2140 = vadd.f32 %v1658, %v2139
        %v2141 = vpop.f32.mrb[0].mxu0
        %2142 = vmatprep.mubr.f32.mxu0 0.0
        %2143 = vmatmul.mubr.f32.gmra.mrb[0].mxu0 %v1797
        %v2144 = vpop.f32.mrb[0].mxu0
        %v2145 = vadd.f32 %v1658, %v2144
        %v2146 = vpop.f32.mrb[0].mxu0
        %2147 = vmatprep.mubr.f32.mxu0 0.0
        %2148 = vmatmul.mubr.f32.gmra.mrb[0].mxu0 %v1800
        %v2149 = vpop.f32.mrb[0].mxu0
        %v2150 = vadd.f32 %v1658, %v2149
        %v2151 = vpop.f32.mrb[0].mxu0
        %2152 = vmatprep.mubr.f32.mxu0 0.0
        %2153 = vmatmul.mubr.f32.gmra.mrb[0].mxu0 %v1803
        %v2154 = vpop.f32.mrb[0].mxu0
        %v2155 = vadd.f32 %v1658, %v2154
        %v2156 = vpop.f32.mrb[0].mxu0
        %2157 = vmatprep.mubr.f32.mxu0 0.0
        %2158 = vmatmul.mubr.f32.gmra.mrb[0].mxu0 %v1806
        %v2159 = vpop.f32.mrb[0].mxu0
        %v2160 = vadd.f32 %v1658, %v2159
        %v2161 = vpop.f32.mrb[0].mxu0
        %2162 = vmatprep.mubr.f32.mxu0 0.0
        %2163 = vmatmul.mubr.f32.gmra.mrb[0].mxu0 %v1809
        %v2164 = vpop.f32.mrb[0].mxu0
        %v2165 = vadd.f32 %v1658, %v2164
        %v2166 = vpop.f32.mrb[0].mxu0
        %2167 = vmatprep.mubr.f32.mxu0 0.0
        %2168 = vmatmul.mubr.f32.gmra.mrb[0].mxu0 %v1812
        %v2169 = vpop.f32.mrb[0].mxu0
        %v2170 = vadd.f32 %v1658, %v2169
        %v2171 = vpop.f32.mrb[0].mxu0
        %2172 = vmatprep.mubr.f32.mxu0 0.0
        %2173 = vmatmul.mubr.f32.gmra.mrb[0].mxu0 %v1815
        %v2174 = vpop.f32.mrb[0].mxu0
        %v2175 = vadd.f32 %v1658, %v2174
        %v2176 = vpop.f32.mrb[0].mxu0
        %2177 = vmatprep.mubr.f32.mxu0 0.0
        %2178 = vmatmul.mubr.f32.gmra.mrb[0].mxu0 %v1818
        %v2179 = vpop.f32.mrb[0].mxu0
        %v2180 = vadd.f32 %v1658, %v2179
        %v2181 = vpop.f32.mrb[0].mxu0
        %2182 = vmatprep.mubr.f32.mxu0 0.0
        %2183 = vmatmul.mubr.f32.gmra.mrb[0].mxu0 %v1821
        %v2184 = vpop.f32.mrb[0].mxu0
        %v2185 = vadd.f32 %v1658, %v2184
        %v2186 = vpop.f32.mrb[0].mxu0
        %2187 = vmatprep.mubr.f32.mxu0 0.0
        %2188 = vmatmul.mubr.f32.gmra.mrb[0].mxu0 %v1824
        %v2189 = vpop.f32.mrb[0].mxu0
        %v2190 = vadd.f32 %v1658, %v2189
        %v2191 = vpop.f32.mrb[0].mxu0
        %2192 = vmatprep.mubr.f32.mxu0 0.0
        %2193 = vmatmul.mubr.f32.gmra.mrb[0].mxu0 %v1827
        %v2194 = vpop.f32.mrb[0].mxu0
        %v2195 = vadd.f32 %v1658, %v2194
        %v2196 = vpop.f32.mrb[0].mxu0
        %2197 = vmatprep.mubr.f32.mxu0 0.0
        %2198 = vmatmul.mubr.f32.gmra.mrb[0].mxu0 %v1830
        %v2199 = vpop.f32.mrb[0].mxu0
        %v2200 = vadd.f32 %v1658, %v2199
        %v2201 = vpop.f32.mrb[0].mxu0
        %2202 = vmatprep.mubr.f32.mxu0 0.0
        %2203 = vmatmul.mubr.f32.gmra.mrb[0].mxu0 %v1833
        %v2204 = vpop.f32.mrb[0].mxu0
        %v2205 = vadd.f32 %v1658, %v2204
        %v2206 = vpop.f32.mrb[0].mxu0
        %2207 = vmatprep.mubr.f32.mxu0 0.0
        %2208 = vmatmul.mubr.f32.gmra.mrb[0].mxu0 %v1836
        %v2209 = vpop.f32.mrb[0].mxu0
        %v2210 = vadd.f32 %v1658, %v2209
        %v2211 = vpop.f32.mrb[0].mxu0
        %2212 = vmatprep.mubr.f32.mxu0 0.0
        %2213 = vmatmul.mubr.f32.gmra.mrb[0].mxu0 %v1839
        %v2214 = vpop.f32.mrb[0].mxu0
        %v2215 = vadd.f32 %v1658, %v2214
        %v2216 = vpop.f32.mrb[0].mxu0
        %2217 = vmatprep.mubr.f32.mxu0 0.0
        %2218 = vmatmul.mubr.f32.gmra.mrb[0].mxu0 %v1842
        %v2219 = vpop.f32.mrb[0].mxu0
        %v2220 = vadd.f32 %v1658, %v2219
        %v2221 = vpop.f32.mrb[0].mxu0
        %2222 = vmatprep.mubr.f32.mxu0 0.0
        %2223 = vmatmul.mubr.f32.gmra.mrb[0].mxu0 %v1845
        %v2224 = vpop.f32.mrb[0].mxu0
        %v2225 = vadd.f32 %v1658, %v2224
        %v2226 = vpop.f32.mrb[0].mxu0
        %2227 = vmatprep.mubr.f32.mxu0 0.0
        %2228 = vmatmul.mubr.f32.gmra.mrb[0].mxu0 %v1848
        %v2229 = vpop.f32.mrb[0].mxu0
        %v2230 = vadd.f32 %v1658, %v2229
        %v2231 = vpop.f32.mrb[0].mxu0
        %2232 = vmatprep.mubr.f32.mxu0 0.0
        %2233 = vmatmul.mubr.f32.gmra.mrb[0].mxu0 %v1851
        %v2234 = vpop.f32.mrb[0].mxu0
        %v2235 = vadd.f32 %v1658, %v2234
        %v2236 = vpop.f32.mrb[0].mxu0
        %2237 = vdwg.mxu0
        %v2238 = vmax.f32 %v1920, 0.0
        %v2239 = vmax.f32 %v1925, 0.0
        %v2240 = vmax.f32 %v1930, 0.0
        %v2241 = vmax.f32 %v1935, 0.0
        %v2242 = vmax.f32 %v1940, 0.0
        %v2243 = vmax.f32 %v1945, 0.0
        %v2244 = vmax.f32 %v1950, 0.0
        %v2245 = vmax.f32 %v1955, 0.0
        %v2246 = vmax.f32 %v1960, 0.0
        %v2247 = vmax.f32 %v1965, 0.0
        %v2248 = vmax.f32 %v1970, 0.0
        %v2249 = vmax.f32 %v1975, 0.0
        %v2250 = vmax.f32 %v1980, 0.0
        %v2251 = vmax.f32 %v1985, 0.0
        %v2252 = vmax.f32 %v1990, 0.0
        %v2253 = vmax.f32 %v1995, 0.0
        %v2254 = vmax.f32 %v2000, 0.0
        %v2255 = vmax.f32 %v2005, 0.0
        %v2256 = vmax.f32 %v2010, 0.0
        %v2257 = vmax.f32 %v2015, 0.0
        %v2258 = vmax.f32 %v2020, 0.0
        %v2259 = vmax.f32 %v2025, 0.0
        %v2260 = vmax.f32 %v2030, 0.0
        %v2261 = vmax.f32 %v2035, 0.0
        %v2262 = vmax.f32 %v2040, 0.0
        %v2263 = vmax.f32 %v2045, 0.0
        %v2264 = vmax.f32 %v2050, 0.0
        %v2265 = vmax.f32 %v2055, 0.0
        %v2266 = vmax.f32 %v2060, 0.0
        %v2267 = vmax.f32 %v2065, 0.0
        %v2268 = vmax.f32 %v2070, 0.0
        %v2269 = vmax.f32 %v2075, 0.0
        %v2270 = vmax.f32 %v2080, 0.0
        %v2271 = vmax.f32 %v2085, 0.0
        %v2272 = vmax.f32 %v2090, 0.0
        %v2273 = vmax.f32 %v2095, 0.0
        %v2274 = vmax.f32 %v2100, 0.0
        %v2275 = vmax.f32 %v2105, 0.0
        %v2276 = vmax.f32 %v2110, 0.0
        %v2277 = vmax.f32 %v2115, 0.0
        %v2278 = vmax.f32 %v2120, 0.0
        %v2279 = vmax.f32 %v2125, 0.0
        %v2280 = vmax.f32 %v2130, 0.0
        %v2281 = vmax.f32 %v2135, 0.0
        %v2282 = vmax.f32 %v2140, 0.0
        %v2283 = vmax.f32 %v2145, 0.0
        %v2284 = vmax.f32 %v2150, 0.0
        %v2285 = vmax.f32 %v2155, 0.0
        %v2286 = vmax.f32 %v2160, 0.0
        %v2287 = vmax.f32 %v2165, 0.0
        %v2288 = vmax.f32 %v2170, 0.0
        %v2289 = vmax.f32 %v2175, 0.0
        %v2290 = vmax.f32 %v2180, 0.0
        %v2291 = vmax.f32 %v2185, 0.0
        %v2292 = vmax.f32 %v2190, 0.0
        %v2293 = vmax.f32 %v2195, 0.0
        %v2294 = vmax.f32 %v2200, 0.0
        %v2295 = vmax.f32 %v2205, 0.0
        %v2296 = vmax.f32 %v2210, 0.0
        %v2297 = vmax.f32 %v2215, 0.0
        %v2298 = vmax.f32 %v2220, 0.0
        %v2299 = vmax.f32 %v2225, 0.0
        %v2300 = vmax.f32 %v2230, 0.0
        %v2301 = vmax.f32 %v2235, 0.0
        %v2302 = vld [vmem:[%s5] sm:$0xff]
        %v2303 = vld [vmem:[%s5 + $0x8] sm:$0xff]
        %v2304 = vld [vmem:[%s5 + $0x10] sm:$0xff]
        %v2305 = vld [vmem:[%s5 + $0x18] sm:$0xff]
        %v2306 = vld [vmem:[%s5 + $0x20] sm:$0xff]
        %v2307 = vld [vmem:[%s5 + $0x28] sm:$0xff]
        %v2308 = vld [vmem:[%s5 + $0x30] sm:$0xff]
        %v2309 = vld [vmem:[%s5 + $0x38] sm:$0xff]
        %v2310 = vld [vmem:[%s5 + $0x40] sm:$0xff]
        %v2311 = vld [vmem:[%s5 + $0x48] sm:$0xff]
        %v2312 = vld [vmem:[%s5 + $0x50] sm:$0xff]
        %v2313 = vld [vmem:[%s5 + $0x58] sm:$0xff]
        %v2314 = vld [vmem:[%s5 + $0x60] sm:$0xff]
        %v2315 = vld [vmem:[%s5 + $0x68] sm:$0xff]
        %v2316 = vld [vmem:[%s5 + $0x70] sm:$0xff]
        %v2317 = vld [vmem:[%s5 + $0x78] sm:$0xff]
        %v2319 = vlaneseq
        %v2320 = vshrl.u32 %v2319, 7
        %v2321 = vsub.s32 0, %v2320
        %v2322 = vrot.slane %v347, %v2321
        %2324 = vmatprep.subr.mxu0 0.0
        %2325 = vmatpush1.msra.mxu0 %v2302
        %2326 = vmatprep.subr.mxu0 0.0
        %2327 = vmatpush1.msra.mxu0 %v2303
        %2328 = vmatprep.subr.mxu0 0.0
        %2329 = vmatpush1.msra.mxu0 %v2304
        %2330 = vmatprep.subr.mxu0 0.0
        %2331 = vmatpush1.msra.mxu0 %v2305
        %2332 = vmatprep.subr.mxu0 0.0
        %2333 = vmatpush1.msra.mxu0 %v2306
        %2334 = vmatprep.subr.mxu0 0.0
        %2335 = vmatpush1.msra.mxu0 %v2307
        %2336 = vmatprep.subr.mxu0 0.0
        %2337 = vmatpush1.msra.mxu0 %v2308
        %2338 = vmatprep.subr.mxu0 0.0
        %2339 = vmatpush1.msra.mxu0 %v2309
        %2340 = vmatprep.subr.mxu0 0.0
        %2341 = vmatpush1.msra.mxu0 %v2310
        %2342 = vmatprep.subr.mxu0 0.0
        %2343 = vmatpush1.msra.mxu0 %v2311
        %2344 = vmatprep.subr.mxu0 0.0
        %2345 = vmatpush1.msra.mxu0 %v2312
        %2346 = vmatprep.subr.mxu0 0.0
        %2347 = vmatpush1.msra.mxu0 %v2313
        %2348 = vmatprep.subr.mxu0 0.0
        %2349 = vmatpush1.msra.mxu0 %v2314
        %2350 = vmatprep.subr.mxu0 0.0
        %2351 = vmatpush1.msra.mxu0 %v2315
        %2352 = vmatprep.subr.mxu0 0.0
        %2353 = vmatpush1.msra.mxu0 %v2316
        %2354 = vmatprep.subr.mxu0 0.0
        %2355 = vmatpush1.msra.mxu0 %v2317
        %2356 = vmatprep.subr.mxu0 0.0
        %2357 = vmatpush1.msra.mxu0 0.0
        %2358 = vmatprep.subr.mxu0 0.0
        %2359 = vmatpush1.msra.mxu0 0.0
        %2360 = vmatprep.subr.mxu0 0.0
        %2361 = vmatpush1.msra.mxu0 0.0
        %2362 = vmatprep.subr.mxu0 0.0
        %2363 = vmatpush1.msra.mxu0 0.0
        %2364 = vmatprep.subr.mxu0 0.0
        %2365 = vmatpush1.msra.mxu0 0.0
        %2366 = vmatprep.subr.mxu0 0.0
        %2367 = vmatpush1.msra.mxu0 0.0
        %2368 = vmatprep.subr.mxu0 0.0
        %2369 = vmatpush1.msra.mxu0 0.0
        %2370 = vmatprep.subr.mxu0 0.0
        %2371 = vmatpush1.msra.mxu0 0.0
        %2372 = vmatprep.subr.mxu0 0.0
        %2373 = vmatpush1.msra.mxu0 0.0
        %2374 = vmatprep.subr.mxu0 0.0
        %2375 = vmatpush1.msra.mxu0 0.0
        %2376 = vmatprep.subr.mxu0 0.0
        %2377 = vmatpush1.msra.mxu0 0.0
        %2378 = vmatprep.subr.mxu0 0.0
        %2379 = vmatpush1.msra.mxu0 0.0
        %2380 = vmatprep.subr.mxu0 0.0
        %2381 = vmatpush1.msra.mxu0 0.0
        %2382 = vmatprep.subr.mxu0 0.0
        %2383 = vmatpush1.msra.mxu0 0.0
        %2384 = vmatprep.subr.mxu0 0.0
        %2385 = vmatpush1.msra.mxu0 0.0
        %2386 = vmatprep.subr.mxu0 0.0
        %2387 = vmatpush1.msra.mxu0 0.0
        %2388 = vmatprep.mubr.f32.mxu0 0.0
        %2389 = vmatmul.mubr.f32.gmra.mrb[0].mxu0 %v2238
        %v2390 = vpop.f32.mrb[0].mxu0
        %v2391 = vadd.f32 %v2322, %v2390
        %v2392 = vpop.f32.mrb[0].mxu0
        %2393 = vmatprep.mubr.f32.mxu0 0.0
        %2394 = vmatmul.mubr.f32.gmra.mrb[0].mxu0 %v2239
        %v2395 = vpop.f32.mrb[0].mxu0
        %v2396 = vadd.f32 %v2322, %v2395
        %v2397 = vpop.f32.mrb[0].mxu0
        %2398 = vmatprep.mubr.f32.mxu0 0.0
        %2399 = vmatmul.mubr.f32.gmra.mrb[0].mxu0 %v2240
        %v2400 = vpop.f32.mrb[0].mxu0
        %v2401 = vadd.f32 %v2322, %v2400
        %v2402 = vpop.f32.mrb[0].mxu0
        %2403 = vmatprep.mubr.f32.mxu0 0.0
        %2404 = vmatmul.mubr.f32.gmra.mrb[0].mxu0 %v2241
        %v2405 = vpop.f32.mrb[0].mxu0
        %v2406 = vadd.f32 %v2322, %v2405
        %v2407 = vpop.f32.mrb[0].mxu0
        %2408 = vmatprep.mubr.f32.mxu0 0.0
        %2409 = vmatmul.mubr.f32.gmra.mrb[0].mxu0 %v2242
        %v2410 = vpop.f32.mrb[0].mxu0
        %v2411 = vadd.f32 %v2322, %v2410
        %v2412 = vpop.f32.mrb[0].mxu0
        %2413 = vmatprep.mubr.f32.mxu0 0.0
        %2414 = vmatmul.mubr.f32.gmra.mrb[0].mxu0 %v2243
        %v2415 = vpop.f32.mrb[0].mxu0
        %v2416 = vadd.f32 %v2322, %v2415
        %v2417 = vpop.f32.mrb[0].mxu0
        %2418 = vmatprep.mubr.f32.mxu0 0.0
        %2419 = vmatmul.mubr.f32.gmra.mrb[0].mxu0 %v2244
        %v2420 = vpop.f32.mrb[0].mxu0
        %v2421 = vadd.f32 %v2322, %v2420
        %v2422 = vpop.f32.mrb[0].mxu0
        %2423 = vmatprep.mubr.f32.mxu0 0.0
        %2424 = vmatmul.mubr.f32.gmra.mrb[0].mxu0 %v2245
        %v2425 = vpop.f32.mrb[0].mxu0
        %v2426 = vadd.f32 %v2322, %v2425
        %v2427 = vpop.f32.mrb[0].mxu0
        %2428 = vmatprep.mubr.f32.mxu0 0.0
        %2429 = vmatmul.mubr.f32.gmra.mrb[0].mxu0 %v2246
        %v2430 = vpop.f32.mrb[0].mxu0
        %v2431 = vadd.f32 %v2322, %v2430
        %v2432 = vpop.f32.mrb[0].mxu0
        %2433 = vmatprep.mubr.f32.mxu0 0.0
        %2434 = vmatmul.mubr.f32.gmra.mrb[0].mxu0 %v2247
        %v2435 = vpop.f32.mrb[0].mxu0
        %v2436 = vadd.f32 %v2322, %v2435
        %v2437 = vpop.f32.mrb[0].mxu0
        %2438 = vmatprep.mubr.f32.mxu0 0.0
        %2439 = vmatmul.mubr.f32.gmra.mrb[0].mxu0 %v2248
        %v2440 = vpop.f32.mrb[0].mxu0
        %v2441 = vadd.f32 %v2322, %v2440
        %v2442 = vpop.f32.mrb[0].mxu0
        %2443 = vmatprep.mubr.f32.mxu0 0.0
        %2444 = vmatmul.mubr.f32.gmra.mrb[0].mxu0 %v2249
        %v2445 = vpop.f32.mrb[0].mxu0
        %v2446 = vadd.f32 %v2322, %v2445
        %v2447 = vpop.f32.mrb[0].mxu0
        %2448 = vmatprep.mubr.f32.mxu0 0.0
        %2449 = vmatmul.mubr.f32.gmra.mrb[0].mxu0 %v2250
        %v2450 = vpop.f32.mrb[0].mxu0
        %v2451 = vadd.f32 %v2322, %v2450
        %v2452 = vpop.f32.mrb[0].mxu0
        %2453 = vmatprep.mubr.f32.mxu0 0.0
        %2454 = vmatmul.mubr.f32.gmra.mrb[0].mxu0 %v2251
        %v2455 = vpop.f32.mrb[0].mxu0
        %v2456 = vadd.f32 %v2322, %v2455
        %v2457 = vpop.f32.mrb[0].mxu0
        %2458 = vmatprep.mubr.f32.mxu0 0.0
        %2459 = vmatmul.mubr.f32.gmra.mrb[0].mxu0 %v2252
        %v2460 = vpop.f32.mrb[0].mxu0
        %v2461 = vadd.f32 %v2322, %v2460
        %v2462 = vpop.f32.mrb[0].mxu0
        %2463 = vmatprep.mubr.f32.mxu0 0.0
        %2464 = vmatmul.mubr.f32.gmra.mrb[0].mxu0 %v2253
        %v2465 = vpop.f32.mrb[0].mxu0
        %v2466 = vadd.f32 %v2322, %v2465
        %v2467 = vpop.f32.mrb[0].mxu0
        %2468 = vmatprep.mubr.f32.mxu0 0.0
        %2469 = vmatmul.mubr.f32.gmra.mrb[0].mxu0 %v2254
        %v2470 = vpop.f32.mrb[0].mxu0
        %v2471 = vadd.f32 %v2322, %v2470
        %v2472 = vpop.f32.mrb[0].mxu0
        %2473 = vmatprep.mubr.f32.mxu0 0.0
        %2474 = vmatmul.mubr.f32.gmra.mrb[0].mxu0 %v2255
        %v2475 = vpop.f32.mrb[0].mxu0
        %v2476 = vadd.f32 %v2322, %v2475
        %v2477 = vpop.f32.mrb[0].mxu0
        %2478 = vmatprep.mubr.f32.mxu0 0.0
        %2479 = vmatmul.mubr.f32.gmra.mrb[0].mxu0 %v2256
        %v2480 = vpop.f32.mrb[0].mxu0
        %v2481 = vadd.f32 %v2322, %v2480
        %v2482 = vpop.f32.mrb[0].mxu0
        %2483 = vmatprep.mubr.f32.mxu0 0.0
        %2484 = vmatmul.mubr.f32.gmra.mrb[0].mxu0 %v2257
        %v2485 = vpop.f32.mrb[0].mxu0
        %v2486 = vadd.f32 %v2322, %v2485
        %v2487 = vpop.f32.mrb[0].mxu0
        %2488 = vmatprep.mubr.f32.mxu0 0.0
        %2489 = vmatmul.mubr.f32.gmra.mrb[0].mxu0 %v2258
        %v2490 = vpop.f32.mrb[0].mxu0
        %v2491 = vadd.f32 %v2322, %v2490
        %v2492 = vpop.f32.mrb[0].mxu0
        %2493 = vmatprep.mubr.f32.mxu0 0.0
        %2494 = vmatmul.mubr.f32.gmra.mrb[0].mxu0 %v2259
        %v2495 = vpop.f32.mrb[0].mxu0
        %v2496 = vadd.f32 %v2322, %v2495
        %v2497 = vpop.f32.mrb[0].mxu0
        %2498 = vmatprep.mubr.f32.mxu0 0.0
        %2499 = vmatmul.mubr.f32.gmra.mrb[0].mxu0 %v2260
        %v2500 = vpop.f32.mrb[0].mxu0
        %v2501 = vadd.f32 %v2322, %v2500
        %v2502 = vpop.f32.mrb[0].mxu0
        %2503 = vmatprep.mubr.f32.mxu0 0.0
        %2504 = vmatmul.mubr.f32.gmra.mrb[0].mxu0 %v2261
        %v2505 = vpop.f32.mrb[0].mxu0
        %v2506 = vadd.f32 %v2322, %v2505
        %v2507 = vpop.f32.mrb[0].mxu0
        %2508 = vmatprep.mubr.f32.mxu0 0.0
        %2509 = vmatmul.mubr.f32.gmra.mrb[0].mxu0 %v2262
        %v2510 = vpop.f32.mrb[0].mxu0
        %v2511 = vadd.f32 %v2322, %v2510
        %v2512 = vpop.f32.mrb[0].mxu0
        %2513 = vmatprep.mubr.f32.mxu0 0.0
        %2514 = vmatmul.mubr.f32.gmra.mrb[0].mxu0 %v2263
        %v2515 = vpop.f32.mrb[0].mxu0
        %v2516 = vadd.f32 %v2322, %v2515
        %v2517 = vpop.f32.mrb[0].mxu0
        %2518 = vmatprep.mubr.f32.mxu0 0.0
        %2519 = vmatmul.mubr.f32.gmra.mrb[0].mxu0 %v2264
        %v2520 = vpop.f32.mrb[0].mxu0
        %v2521 = vadd.f32 %v2322, %v2520
        %v2522 = vpop.f32.mrb[0].mxu0
        %2523 = vmatprep.mubr.f32.mxu0 0.0
        %2524 = vmatmul.mubr.f32.gmra.mrb[0].mxu0 %v2265
        %v2525 = vpop.f32.mrb[0].mxu0
        %v2526 = vadd.f32 %v2322, %v2525
        %v2527 = vpop.f32.mrb[0].mxu0
        %2528 = vmatprep.mubr.f32.mxu0 0.0
        %2529 = vmatmul.mubr.f32.gmra.mrb[0].mxu0 %v2266
        %v2530 = vpop.f32.mrb[0].mxu0
        %v2531 = vadd.f32 %v2322, %v2530
        %v2532 = vpop.f32.mrb[0].mxu0
        %2533 = vmatprep.mubr.f32.mxu0 0.0
        %2534 = vmatmul.mubr.f32.gmra.mrb[0].mxu0 %v2267
        %v2535 = vpop.f32.mrb[0].mxu0
        %v2536 = vadd.f32 %v2322, %v2535
        %v2537 = vpop.f32.mrb[0].mxu0
        %2538 = vmatprep.mubr.f32.mxu0 0.0
        %2539 = vmatmul.mubr.f32.gmra.mrb[0].mxu0 %v2268
        %v2540 = vpop.f32.mrb[0].mxu0
        %v2541 = vadd.f32 %v2322, %v2540
        %v2542 = vpop.f32.mrb[0].mxu0
        %2543 = vmatprep.mubr.f32.mxu0 0.0
        %2544 = vmatmul.mubr.f32.gmra.mrb[0].mxu0 %v2269
        %v2545 = vpop.f32.mrb[0].mxu0
        %v2546 = vadd.f32 %v2322, %v2545
        %v2547 = vpop.f32.mrb[0].mxu0
        %2548 = vmatprep.mubr.f32.mxu0 0.0
        %2549 = vmatmul.mubr.f32.gmra.mrb[0].mxu0 %v2270
        %v2550 = vpop.f32.mrb[0].mxu0
        %v2551 = vadd.f32 %v2322, %v2550
        %v2552 = vpop.f32.mrb[0].mxu0
        %2553 = vmatprep.mubr.f32.mxu0 0.0
        %2554 = vmatmul.mubr.f32.gmra.mrb[0].mxu0 %v2271
        %v2555 = vpop.f32.mrb[0].mxu0
        %v2556 = vadd.f32 %v2322, %v2555
        %v2557 = vpop.f32.mrb[0].mxu0
        %2558 = vmatprep.mubr.f32.mxu0 0.0
        %2559 = vmatmul.mubr.f32.gmra.mrb[0].mxu0 %v2272
        %v2560 = vpop.f32.mrb[0].mxu0
        %v2561 = vadd.f32 %v2322, %v2560
        %v2562 = vpop.f32.mrb[0].mxu0
        %2563 = vmatprep.mubr.f32.mxu0 0.0
        %2564 = vmatmul.mubr.f32.gmra.mrb[0].mxu0 %v2273
        %v2565 = vpop.f32.mrb[0].mxu0
        %v2566 = vadd.f32 %v2322, %v2565
        %v2567 = vpop.f32.mrb[0].mxu0
        %2568 = vmatprep.mubr.f32.mxu0 0.0
        %2569 = vmatmul.mubr.f32.gmra.mrb[0].mxu0 %v2274
        %v2570 = vpop.f32.mrb[0].mxu0
        %v2571 = vadd.f32 %v2322, %v2570
        %v2572 = vpop.f32.mrb[0].mxu0
        %2573 = vmatprep.mubr.f32.mxu0 0.0
        %2574 = vmatmul.mubr.f32.gmra.mrb[0].mxu0 %v2275
        %v2575 = vpop.f32.mrb[0].mxu0
        %v2576 = vadd.f32 %v2322, %v2575
        %v2577 = vpop.f32.mrb[0].mxu0
        %2578 = vmatprep.mubr.f32.mxu0 0.0
        %2579 = vmatmul.mubr.f32.gmra.mrb[0].mxu0 %v2276
        %v2580 = vpop.f32.mrb[0].mxu0
        %v2581 = vadd.f32 %v2322, %v2580
        %v2582 = vpop.f32.mrb[0].mxu0
        %2583 = vmatprep.mubr.f32.mxu0 0.0
        %2584 = vmatmul.mubr.f32.gmra.mrb[0].mxu0 %v2277
        %v2585 = vpop.f32.mrb[0].mxu0
        %v2586 = vadd.f32 %v2322, %v2585
        %v2587 = vpop.f32.mrb[0].mxu0
        %2588 = vmatprep.mubr.f32.mxu0 0.0
        %2589 = vmatmul.mubr.f32.gmra.mrb[0].mxu0 %v2278
        %v2590 = vpop.f32.mrb[0].mxu0
        %v2591 = vadd.f32 %v2322, %v2590
        %v2592 = vpop.f32.mrb[0].mxu0
        %2593 = vmatprep.mubr.f32.mxu0 0.0
        %2594 = vmatmul.mubr.f32.gmra.mrb[0].mxu0 %v2279
        %v2595 = vpop.f32.mrb[0].mxu0
        %v2596 = vadd.f32 %v2322, %v2595
        %v2597 = vpop.f32.mrb[0].mxu0
        %2598 = vmatprep.mubr.f32.mxu0 0.0
        %2599 = vmatmul.mubr.f32.gmra.mrb[0].mxu0 %v2280
        %v2600 = vpop.f32.mrb[0].mxu0
        %v2601 = vadd.f32 %v2322, %v2600
        %v2602 = vpop.f32.mrb[0].mxu0
        %2603 = vmatprep.mubr.f32.mxu0 0.0
        %2604 = vmatmul.mubr.f32.gmra.mrb[0].mxu0 %v2281
        %v2605 = vpop.f32.mrb[0].mxu0
        %v2606 = vadd.f32 %v2322, %v2605
        %v2607 = vpop.f32.mrb[0].mxu0
        %2608 = vmatprep.mubr.f32.mxu0 0.0
        %2609 = vmatmul.mubr.f32.gmra.mrb[0].mxu0 %v2282
        %v2610 = vpop.f32.mrb[0].mxu0
        %v2611 = vadd.f32 %v2322, %v2610
        %v2612 = vpop.f32.mrb[0].mxu0
        %2613 = vmatprep.mubr.f32.mxu0 0.0
        %2614 = vmatmul.mubr.f32.gmra.mrb[0].mxu0 %v2283
        %v2615 = vpop.f32.mrb[0].mxu0
        %v2616 = vadd.f32 %v2322, %v2615
        %v2617 = vpop.f32.mrb[0].mxu0
        %2618 = vmatprep.mubr.f32.mxu0 0.0
        %2619 = vmatmul.mubr.f32.gmra.mrb[0].mxu0 %v2284
        %v2620 = vpop.f32.mrb[0].mxu0
        %v2621 = vadd.f32 %v2322, %v2620
        %v2622 = vpop.f32.mrb[0].mxu0
        %2623 = vmatprep.mubr.f32.mxu0 0.0
        %2624 = vmatmul.mubr.f32.gmra.mrb[0].mxu0 %v2285
        %v2625 = vpop.f32.mrb[0].mxu0
        %v2626 = vadd.f32 %v2322, %v2625
        %v2627 = vpop.f32.mrb[0].mxu0
        %2628 = vmatprep.mubr.f32.mxu0 0.0
        %2629 = vmatmul.mubr.f32.gmra.mrb[0].mxu0 %v2286
        %v2630 = vpop.f32.mrb[0].mxu0
        %v2631 = vadd.f32 %v2322, %v2630
        %v2632 = vpop.f32.mrb[0].mxu0
        %2633 = vmatprep.mubr.f32.mxu0 0.0
        %2634 = vmatmul.mubr.f32.gmra.mrb[0].mxu0 %v2287
        %v2635 = vpop.f32.mrb[0].mxu0
        %v2636 = vadd.f32 %v2322, %v2635
        %v2637 = vpop.f32.mrb[0].mxu0
        %2638 = vmatprep.mubr.f32.mxu0 0.0
        %2639 = vmatmul.mubr.f32.gmra.mrb[0].mxu0 %v2288
        %v2640 = vpop.f32.mrb[0].mxu0
        %v2641 = vadd.f32 %v2322, %v2640
        %v2642 = vpop.f32.mrb[0].mxu0
        %2643 = vmatprep.mubr.f32.mxu0 0.0
        %2644 = vmatmul.mubr.f32.gmra.mrb[0].mxu0 %v2289
        %v2645 = vpop.f32.mrb[0].mxu0
        %v2646 = vadd.f32 %v2322, %v2645
        %v2647 = vpop.f32.mrb[0].mxu0
        %2648 = vmatprep.mubr.f32.mxu0 0.0
        %2649 = vmatmul.mubr.f32.gmra.mrb[0].mxu0 %v2290
        %v2650 = vpop.f32.mrb[0].mxu0
        %v2651 = vadd.f32 %v2322, %v2650
        %v2652 = vpop.f32.mrb[0].mxu0
        %2653 = vmatprep.mubr.f32.mxu0 0.0
        %2654 = vmatmul.mubr.f32.gmra.mrb[0].mxu0 %v2291
        %v2655 = vpop.f32.mrb[0].mxu0
        %v2656 = vadd.f32 %v2322, %v2655
        %v2657 = vpop.f32.mrb[0].mxu0
        %2658 = vmatprep.mubr.f32.mxu0 0.0
        %2659 = vmatmul.mubr.f32.gmra.mrb[0].mxu0 %v2292
        %v2660 = vpop.f32.mrb[0].mxu0
        %v2661 = vadd.f32 %v2322, %v2660
        %v2662 = vpop.f32.mrb[0].mxu0
        %2663 = vmatprep.mubr.f32.mxu0 0.0
        %2664 = vmatmul.mubr.f32.gmra.mrb[0].mxu0 %v2293
        %v2665 = vpop.f32.mrb[0].mxu0
        %v2666 = vadd.f32 %v2322, %v2665
        %v2667 = vpop.f32.mrb[0].mxu0
        %2668 = vmatprep.mubr.f32.mxu0 0.0
        %2669 = vmatmul.mubr.f32.gmra.mrb[0].mxu0 %v2294
        %v2670 = vpop.f32.mrb[0].mxu0
        %v2671 = vadd.f32 %v2322, %v2670
        %v2672 = vpop.f32.mrb[0].mxu0
        %2673 = vmatprep.mubr.f32.mxu0 0.0
        %2674 = vmatmul.mubr.f32.gmra.mrb[0].mxu0 %v2295
        %v2675 = vpop.f32.mrb[0].mxu0
        %v2676 = vadd.f32 %v2322, %v2675
        %v2677 = vpop.f32.mrb[0].mxu0
        %2678 = vmatprep.mubr.f32.mxu0 0.0
        %2679 = vmatmul.mubr.f32.gmra.mrb[0].mxu0 %v2296
        %v2680 = vpop.f32.mrb[0].mxu0
        %v2681 = vadd.f32 %v2322, %v2680
        %v2682 = vpop.f32.mrb[0].mxu0
        %2683 = vmatprep.mubr.f32.mxu0 0.0
        %2684 = vmatmul.mubr.f32.gmra.mrb[0].mxu0 %v2297
        %v2685 = vpop.f32.mrb[0].mxu0
        %v2686 = vadd.f32 %v2322, %v2685
        %v2687 = vpop.f32.mrb[0].mxu0
        %2688 = vmatprep.mubr.f32.mxu0 0.0
        %2689 = vmatmul.mubr.f32.gmra.mrb[0].mxu0 %v2298
        %v2690 = vpop.f32.mrb[0].mxu0
        %v2691 = vadd.f32 %v2322, %v2690
        %v2692 = vpop.f32.mrb[0].mxu0
        %2693 = vmatprep.mubr.f32.mxu0 0.0
        %2694 = vmatmul.mubr.f32.gmra.mrb[0].mxu0 %v2299
        %v2695 = vpop.f32.mrb[0].mxu0
        %v2696 = vadd.f32 %v2322, %v2695
        %v2697 = vpop.f32.mrb[0].mxu0
        %2698 = vmatprep.mubr.f32.mxu0 0.0
        %2699 = vmatmul.mubr.f32.gmra.mrb[0].mxu0 %v2300
        %v2700 = vpop.f32.mrb[0].mxu0
        %v2701 = vadd.f32 %v2322, %v2700
        %v2702 = vpop.f32.mrb[0].mxu0
        %2703 = vmatprep.mubr.f32.mxu0 0.0
        %2704 = vmatmul.mubr.f32.gmra.mrb[0].mxu0 %v2301
        %v2705 = vpop.f32.mrb[0].mxu0
        %v2706 = vadd.f32 %v2322, %v2705
        %v2707 = vpop.f32.mrb[0].mxu0
        %2708 = vdwg.mxu0
        %2709 = vst [vmem:[%s272] sm:$0xff] %v2391
        %2710 = vst [vmem:[%s272 + $0x8] sm:$0xff] %v2396
        %2711 = vst [vmem:[%s272 + $0x10] sm:$0xff] %v2401
        %2712 = vst [vmem:[%s272 + $0x18] sm:$0xff] %v2406
        %2713 = vst [vmem:[%s272 + $0x20] sm:$0xff] %v2411
        %2714 = vst [vmem:[%s272 + $0x28] sm:$0xff] %v2416
        %2715 = vst [vmem:[%s272 + $0x30] sm:$0xff] %v2421
        %2716 = vst [vmem:[%s272 + $0x38] sm:$0xff] %v2426
        %2717 = vst [vmem:[%s272 + $0x40] sm:$0xff] %v2431
        %2718 = vst [vmem:[%s272 + $0x48] sm:$0xff] %v2436
        %2719 = vst [vmem:[%s272 + $0x50] sm:$0xff] %v2441
        %2720 = vst [vmem:[%s272 + $0x58] sm:$0xff] %v2446
        %2721 = vst [vmem:[%s272 + $0x60] sm:$0xff] %v2451
        %2722 = vst [vmem:[%s272 + $0x68] sm:$0xff] %v2456
        %2723 = vst [vmem:[%s272 + $0x70] sm:$0xff] %v2461
        %2724 = vst [vmem:[%s272 + $0x78] sm:$0xff] %v2466
        %2725 = vst [vmem:[%s272 + $0x80] sm:$0xff] %v2471
        %2726 = vst [vmem:[%s272 + $0x88] sm:$0xff] %v2476
        %2727 = vst [vmem:[%s272 + $0x90] sm:$0xff] %v2481
        %2728 = vst [vmem:[%s272 + $0x98] sm:$0xff] %v2486
        %2729 = vst [vmem:[%s272 + $0xa0] sm:$0xff] %v2491
        %2730 = vst [vmem:[%s272 + $0xa8] sm:$0xff] %v2496
        %2731 = vst [vmem:[%s272 + $0xb0] sm:$0xff] %v2501
        %2732 = vst [vmem:[%s272 + $0xb8] sm:$0xff] %v2506
        %2733 = vst [vmem:[%s272 + $0xc0] sm:$0xff] %v2511
        %2734 = vst [vmem:[%s272 + $0xc8] sm:$0xff] %v2516
        %2735 = vst [vmem:[%s272 + $0xd0] sm:$0xff] %v2521
        %2736 = vst [vmem:[%s272 + $0xd8] sm:$0xff] %v2526
        %2737 = vst [vmem:[%s272 + $0xe0] sm:$0xff] %v2531
        %2738 = vst [vmem:[%s272 + $0xe8] sm:$0xff] %v2536
        %2739 = vst [vmem:[%s272 + $0xf0] sm:$0xff] %v2541
        %2740 = vst [vmem:[%s272 + $0xf8] sm:$0xff] %v2546
        %2741 = vst [vmem:[%s272 + $0x100] sm:$0xff] %v2551
        %2742 = vst [vmem:[%s272 + $0x108] sm:$0xff] %v2556
        %2743 = vst [vmem:[%s272 + $0x110] sm:$0xff] %v2561
        %2744 = vst [vmem:[%s272 + $0x118] sm:$0xff] %v2566
        %2745 = vst [vmem:[%s272 + $0x120] sm:$0xff] %v2571
        %2746 = vst [vmem:[%s272 + $0x128] sm:$0xff] %v2576
        %2747 = vst [vmem:[%s272 + $0x130] sm:$0xff] %v2581
        %2748 = vst [vmem:[%s272 + $0x138] sm:$0xff] %v2586
        %2749 = vst [vmem:[%s272 + $0x140] sm:$0xff] %v2591
        %2750 = vst [vmem:[%s272 + $0x148] sm:$0xff] %v2596
        %2751 = vst [vmem:[%s272 + $0x150] sm:$0xff] %v2601
        %2752 = vst [vmem:[%s272 + $0x158] sm:$0xff] %v2606
        %2753 = vst [vmem:[%s272 + $0x160] sm:$0xff] %v2611
        %2754 = vst [vmem:[%s272 + $0x168] sm:$0xff] %v2616
        %2755 = vst [vmem:[%s272 + $0x170] sm:$0xff] %v2621
        %2756 = vst [vmem:[%s272 + $0x178] sm:$0xff] %v2626
        %2757 = vst [vmem:[%s272 + $0x180] sm:$0xff] %v2631
        %2758 = vst [vmem:[%s272 + $0x188] sm:$0xff] %v2636
        %2759 = vst [vmem:[%s272 + $0x190] sm:$0xff] %v2641
        %2760 = vst [vmem:[%s272 + $0x198] sm:$0xff] %v2646
        %2761 = vst [vmem:[%s272 + $0x1a0] sm:$0xff] %v2651
        %2762 = vst [vmem:[%s272 + $0x1a8] sm:$0xff] %v2656
        %2763 = vst [vmem:[%s272 + $0x1b0] sm:$0xff] %v2661
        %2764 = vst [vmem:[%s272 + $0x1b8] sm:$0xff] %v2666
        %2765 = vst [vmem:[%s272 + $0x1c0] sm:$0xff] %v2671
        %2766 = vst [vmem:[%s272 + $0x1c8] sm:$0xff] %v2676
        %2767 = vst [vmem:[%s272 + $0x1d0] sm:$0xff] %v2681
        %2768 = vst [vmem:[%s272 + $0x1d8] sm:$0xff] %v2686
        %2769 = vst [vmem:[%s272 + $0x1e0] sm:$0xff] %v2691
        %2770 = vst [vmem:[%s272 + $0x1e8] sm:$0xff] %v2696
        %2771 = vst [vmem:[%s272 + $0x1f0] sm:$0xff] %v2701
        %2772 = vst [vmem:[%s272 + $0x1f8] sm:$0xff] %v2706
        %s2773 = sand.u32 %s181, 1
        %s2774 = scalar_lea.sflag [#allocation3], %s2773
        %s2775 = sand.u32 %s181, 1
        %s2776 = smul.addr %s2775, 512
        %s2777 = scalar_lea.vmem [#allocation2], %s2776
        // Predicated region
        $region49: #{tpu_custom_call.1} parent=47 // pred_check
          %p2778 = pneg %p191
        $region50: #{tpu_custom_call.1} parent=47 // pred_check_branch
          %2780 = sbr.rel (%p2778) target = $region52
        $region51: #{tpu_custom_call.1} parent=47 // pred_region
          %s2781 = smul.u32 64, %s21
          %s2783 = ssub.s32 8192, 8192
          %2784 = vsyncadd %s2774, %s2783
          %s2785 = smul.addr %s2781, 128
          %s2786 = scalar_lea.hbm %s7, %s2785
          %s2787 = sshll.u32 %s2777, 4
          %s2788 = int_to_ptr.vmem [resolvable:$true] %s2787
          %2793 = dma.vmem_to_hbm [thread:$0]  %s2788, 8192, %s2786, %s2774, 128, 128, 8
        $region52: #{tpu_custom_call.1} parent=47 // pred_fallthru
          _
      $region48: #{tpu_custom_call.1} parent=5 // pred_fallthru
        _
      %p2794 = scmp.le.s32.totalorder 2, %s16
      // Predicated region
      $region53: #{tpu_custom_call.1} parent=5 // pred_check
        %p2795 = pneg %p2794
      $region54: #{tpu_custom_call.1} parent=5 // pred_check_branch
        %2797 = sbr.rel (%p2795) target = $region56
      $region55: #{tpu_custom_call.1} parent=5 // pred_region
        %s2798 = ssub.s32 %s16, 2
        // Predicated region
        $region57: #{tpu_custom_call.1} parent=55 // pred_check
          %p2799 = pneg %p197
        $region58: #{tpu_custom_call.1} parent=55 // pred_check_branch
          %2801 = sbr.rel (%p2799) target = $region60
        $region59: #{tpu_custom_call.1} parent=55 // pred_region
          %s2802 = sand.u32 %s182, 1
          %s2803 = scalar_lea.sflag [#allocation3], %s2802
          %s2804 = sand.u32 %s182, 1
          %s2805 = smul.addr %s2804, 512
          %s2806 = scalar_lea.vmem [#allocation2], %s2805
          %2807 = dma.done %s2803, 8192
        $region60: #{tpu_custom_call.1} parent=55 // pred_fallthru
          _
      $region56: #{tpu_custom_call.1} parent=5 // pred_fallthru
        _
    $region6: #{tpu_custom_call.1} parent=1 // loop_footer
      %s20 = sadd.s32 1, %s16
    $region7: #{tpu_custom_call.1} parent=1 // loop_footer_branch
      %15 = sbr.rel target = $region3
    $region8: #{tpu_custom_call.1} parent=1 // loop_exit
      _
    %2808 = vsyncpa [#allocation3], 1
    %s2809 = scalar_lea.sflag [#allocation3], 1
    %2810 = vsyncpa %s2809, 1

</llo_original>
